<compile_context>
chip_gen: v7x
topology: tpu7x:2x2x1
jax: 0.10.0
libtpu: 0.0.40
codegen_flags: <defaults>
</compile_context>

<pallas_src>
import functools

import jax
import jax.numpy as jnp
from jax.experimental import pallas as pl
from jax.experimental.pallas import tpu as pltpu


# ---------------------------------------------------------------------------
# Kernel 1: tiled rfft (two DFT matmuls per (batch-block, freq-tile) step)
#           + per-frequency channel-energy reduction (tiny ones matmul).
# ---------------------------------------------------------------------------
def _rfft_energy_kernel(x_ref, fwd_ref, csum_ref, xri_ref, e_ref):
    # x_ref:    (N_pad, BLK)        bf16   lane = b_local*C + c
    # fwd_ref:  (2, F_tile, N_pad)  bf16   [cos ; -sin] rows of this freq tile
    # csum_ref: (BLK, B_blk)        f32    ones block-diag (lane -> local batch)
    # xri_ref:  (2, F_tile, BLK)    bf16   [Re X ; Im X]
    # e_ref:    (1, F_tile, B_blk)  f32    sum_c |X|^2 per (freq, local batch)
    x = x_ref[...]
    xr = jnp.dot(fwd_ref[0], x, preferred_element_type=jnp.float32)
    xi = jnp.dot(fwd_ref[1], x, preferred_element_type=jnp.float32)
    sq = xr * xr + xi * xi                                       # f32 accumulators
    e_ref[0] = jnp.dot(sq, csum_ref[...], preferred_element_type=jnp.float32)
    xri_ref[0] = xr.astype(xri_ref.dtype)
    xri_ref[1] = xi.astype(xri_ref.dtype)


# ---------------------------------------------------------------------------
# Kernel 2a: adaptive mask + complex spectral weighting, once per batch block.
# ---------------------------------------------------------------------------
def _spectral_weight_kernel(xri_ref, mask_ref, wl_ref, exp_ref, y_ref):
    # xri_ref:  (2, F_pad, BLK)    bf16
    # mask_ref: (1, F_pad, B_blk)  f32    adaptive mask per (freq, local batch)
    # wl_ref:   (4, BLK)           f32    [wr; wi; whr; whi] tiled across batches
    # exp_ref:  (B_blk, BLK)       f32    ones expander (local batch -> lanes)
    # y_ref:    (2, F_pad, BLK)    bf16   weighted spectrum [Re Y ; Im Y]
    xr = xri_ref[0].astype(jnp.float32)
    xi = xri_ref[1].astype(jnp.float32)
    # broadcast per-(f, b) mask to per-(f, lane) with a tiny ones matmul
    mask = jnp.dot(mask_ref[0], exp_ref[...], preferred_element_type=jnp.float32)
    wr, wi = wl_ref[0:1, :], wl_ref[1:2, :]
    whr, whi = wl_ref[2:3, :], wl_ref[3:4, :]
    # x*w + (x*mask)*w_high == x * (w + mask*w_high)
    wer = wr + mask * whr
    wei = wi + mask * whi
    y_ref[0] = (xr * wer - xi * wei).astype(y_ref.dtype)
    y_ref[1] = (xr * wei + xi * wer).astype(y_ref.dtype)


# ---------------------------------------------------------------------------
# Kernel 2b: pure tiled inverse-DFT matmul (two accumulated dots, no concat).
# ---------------------------------------------------------------------------
def _irfft_kernel(inv_ref, y_ref, o_ref):
    # inv_ref: (2, TILE_N, F_pad) bf16   [cinv ; sinv] rows of this time tile
    # y_ref:   (2, F_pad, BLK)    bf16
    # o_ref:   (TILE_N, BLK)      out dtype
    out = jnp.dot(inv_ref[0], y_ref[0], preferred_element_type=jnp.float32)
    out = out + jnp.dot(inv_ref[1], y_ref[1], preferred_element_type=jnp.float32)
    o_ref[...] = out.astype(o_ref.dtype)


# ---------------------------------------------------------------------------
# DFT matrices for rfft / irfft with norm='ortho' (glue, plain JAX; constant-
# folded under jit).
# ---------------------------------------------------------------------------
def _dft_matrices(N):
    F0 = N // 2 + 1
    n = jnp.arange(N, dtype=jnp.float32)
    f = jnp.arange(F0, dtype=jnp.float32)
    ang = 2.0 * jnp.pi * f[:, None] * n[None, :] / N             # (F0, N)
    s = 1.0 / jnp.sqrt(jnp.float32(N))
    cf = jnp.cos(ang) * s                                        # Re of rfft
    sf = -jnp.sin(ang) * s                                       # Im of rfft
    mult = jnp.full((F0,), 2.0, jnp.float32).at[0].set(1.0)
    if N % 2 == 0:
        mult = mult.at[F0 - 1].set(1.0)                          # Nyquist once
    cinv = jnp.cos(ang).T * mult[None, :] * s                    # (N, F0)
    sinv = -jnp.sin(ang).T * mult[None, :] * s                   # (N, F0)
    return cf, sf, cinv, sinv


def _round_up(x, m):
    return ((x + m - 1) // m) * m


def _hw_config():
    # Generation-aware VMEM budgeting; conservative (v7x-safe) fallback.
    vmem_cap = 64 * 1024 * 1024
    try:
        info = pltpu.get_tpu_info()
        vmem_cap = int(getattr(info, "vmem_capacity_bytes", vmem_cap))
    except Exception:
        pass
    if vmem_cap >= 128 * 1024 * 1024:          # v5e / v6e
        return {"vmem_limit": 96 * 1024 * 1024,
                "fwd_budget": 32 * 1024 * 1024,
                "tile_n_cap": 512}
    return {"vmem_limit": 48 * 1024 * 1024,    # v7x (64 MiB per TC)
            "fwd_budget": 16 * 1024 * 1024,
            "tile_n_cap": 256}


def _f_tiling(F0, N_pad, budget_bytes):
    # Choose a frequency-row tile so the double-buffered fwd slice
    # (2 * F_tile * N_pad bf16, x2 buffers) fits the budget.
    f16 = _round_up(F0, 16)
    cap = (budget_bytes // (8 * N_pad)) // 16 * 16
    cap = max(16, min(cap, 1024))
    if f16 <= cap:
        return f16, f16, 1
    num = -(-f16 // cap)                       # ceil
    tile = _round_up(-(-f16 // num), 16)
    return tile * num, tile, num


def _pick_row_tile(total, cap, unit=128):
    # Largest multiple of `unit` dividing `total`, <= cap, and <= total//2 when
    # possible so the time-tile grid axis has >= 2 steps.
    limit = min(cap, total if total < 2 * unit else total // 2)
    limit -= limit % unit
    limit = max(limit, unit)
    for d in range(limit, unit - 1, -unit):
        if total % d == 0:
            return d
    return unit


# ---------------------------------------------------------------------------
# Forward wrapper
# ---------------------------------------------------------------------------
def feature_extraction_block(x_in, complex_weight, complex_weight_high,
                             threshold_param, adaptive_filter=True,
                             return_internals=False):
    B, N, C = x_in.shape
    assert C == 64, "module's final .view(B, N, 64) implies dim == 64"
    out_dtype = x_in.dtype
    F0 = N // 2 + 1

    cfg = _hw_config()
    N_pad = _round_up(N, 128)
    BLK = 256                                   # lanes per batch-block step
    B_blk = BLK // C                            # whole batches per step (=4)
    B_pad = _round_up(B, B_blk)
    BC_pad = B_pad * C
    num_bc = BC_pad // BLK
    F_pad, F_tile, num_ft = _f_tiling(F0, N_pad, cfg["fwd_budget"])
    TILE_N = _pick_row_tile(N_pad, cfg["tile_n_cap"])
    num_nt = N_pad // TILE_N

    # lane-dense bf16 input slab: slab[n, b*C + c] = x[b, n, c]
    xs = jnp.transpose(x_in.astype(jnp.bfloat16), (1, 0, 2)).reshape(N, B * C)
    x_slab = jnp.zeros((N_pad, BC_pad), jnp.bfloat16).at[:N, :B * C].set(xs)

    # DFT operands (bf16 MXU inputs; padded rows/cols are zero)
    cf, sf, cinv, sinv = _dft_matrices(N)
    fwd = (jnp.zeros((2, F_pad, N_pad), jnp.float32)
           .at[0, :F0, :N].set(cf)
           .at[1, :F0, :N].set(sf)).astype(jnp.bfloat16)
    inv = (jnp.zeros((2, N_pad, F_pad), jnp.float32)
           .at[0, :N, :F0].set(cinv)
           .at[1, :N, :F0].set(sinv)).astype(jnp.bfloat16)

    # ones matrices: lane <-> local-batch reduction / broadcast
    lane = jnp.arange(BLK)
    csum = (lane[:, None] // C == jnp.arange(B_blk)[None, :]).astype(jnp.float32)
    expand = jnp.transpose(csum)                                 # (B_blk, BLK)

    # ---- Kernel 1: tiled rfft + per-frequency channel energy ----------------
    xri, energy = pl.pallas_call(
        _rfft_energy_kernel,
        out_shape=(jax.ShapeDtypeStruct((2, F_pad, BC_pad), jnp.bfloat16),
                   jax.ShapeDtypeStruct((num_bc, F_pad, B_blk), jnp.float32)),
        grid=(num_bc, num_ft),
        in_specs=[
            pl.BlockSpec((N_pad, BLK), lambda i, f: (0, i)),
            pl.BlockSpec((2, F_tile, N_pad), lambda i, f: (0, f, 0)),
            pl.BlockSpec((BLK, B_blk), lambda i, f: (0, 0)),
        ],
        out_specs=(
            pl.BlockSpec((2, F_tile, BLK), lambda i, f: (0, f, i)),
            pl.BlockSpec((1, F_tile, B_blk), lambda i, f: (i, f, 0)),
        ),
        compiler_params=pltpu.CompilerParams(
            dimension_semantics=("parallel", "parallel"),
            vmem_limit_bytes=cfg["vmem_limit"]),
    )(x_slab, fwd, csum)

    # ---- Glue: order statistics (torch semantics) in plain JAX --------------
    # TODO(synk): per-batch lower-median + global linear-interpolated quantile
    # need a global sort over B*F values; no clean Pallas sort, kept in JAX.
    e_bf = jnp.transpose(energy, (0, 2, 1)).reshape(B_pad, F_pad)[:B, :F0]
    if adaptive_filter:
        sorted_e = jnp.sort(e_bf, axis=1)
        median = sorted_e[:, (F0 - 1) // 2][:, None]             # lower median
        ne = e_bf / (median + 1e-6)
        q = threshold_param.reshape(()).astype(jnp.float32)
        flat = jnp.sort(ne.reshape(-1))
        m = flat.shape[0]
        pos = q * (m - 1)
        lo = jnp.floor(pos).astype(jnp.int32)
        hi = jnp.minimum(lo + 1, m - 1)
        frac = pos - lo.astype(jnp.float32)
        threshold = flat[lo] * (1.0 - frac) + flat[hi] * frac    # torch.quantile
        mask_bf = (ne > threshold).astype(jnp.float32)           # (B, F0)
    else:
        mask_bf = jnp.zeros((B, F0), jnp.float32)
    mask_p = jnp.zeros((B_pad, F_pad), jnp.float32).at[:B, :F0].set(mask_bf)
    mask_blk = jnp.transpose(mask_p.reshape(num_bc, B_blk, F_pad), (0, 2, 1))

    # per-lane complex weights: [wr; wi; whr; whi], tiled over padded batches
    wl = jnp.stack([complex_weight[:, 0], complex_weight[:, 1],
                    complex_weight_high[:, 0], complex_weight_high[:, 1]]
                   ).astype(jnp.float32)                         # (4, C)
    wlanes = jnp.tile(wl, (1, B_pad))                            # (4, BC_pad)

    # ---- Kernel 2a: mask + spectral weighting (once per batch block) --------
    y = pl.pallas_call(
        _spectral_weight_kernel,
        out_shape=jax.ShapeDtypeStruct((2, F_pad, BC_pad), jnp.bfloat16),
        grid=(num_bc,),
        in_specs=[
            pl.BlockSpec((2, F_pad, BLK), lambda i: (0, 0, i)),
            pl.BlockSpec((1, F_pad, B_blk), lambda i: (i, 0, 0)),
            pl.BlockSpec((4, BLK), lambda i: (0, i)),
            pl.BlockSpec((B_blk, BLK), lambda i: (0, 0)),
        ],
        out_specs=pl.BlockSpec((2, F_pad, BLK), lambda i: (0, 0, i)),
        compiler_params=pltpu.CompilerParams(
            dimension_semantics=("parallel",),
            vmem_limit_bytes=cfg["vmem_limit"]),
    )(xri, mask_blk, wlanes, expand)

    # ---- Kernel 2b: tiled inverse-DFT matmul ---------------------------------
    out_slab = pl.pallas_call(
        _irfft_kernel,
        out_shape=jax.ShapeDtypeStruct((N_pad, BC_pad), out_dtype),
        grid=(num_bc, num_nt),           # batch-block outer, time-tile inner:
                                         # the y block stays resident across t
        in_specs=[
            pl.BlockSpec((2, TILE_N, F_pad), lambda i, t: (0, t, 0)),
            pl.BlockSpec((2, F_pad, BLK), lambda i, t: (0, 0, i)),
        ],
        out_specs=pl.BlockSpec((TILE_N, BLK), lambda i, t: (t, i)),
        compiler_params=pltpu.CompilerParams(
            dimension_semantics=("parallel", "parallel"),
            vmem_limit_bytes=cfg["vmem_limit"]),
    )(inv, y)

    out = (out_slab[:N, :B * C].reshape(N, B, C)
           .transpose(1, 0, 2).reshape(B, N, 64).astype(out_dtype))

    if return_internals:
        xr = (xri[0, :F0, :B * C].astype(jnp.float32)
              .reshape(F0, B, C).transpose(1, 0, 2))             # (B, F0, C)
        xi = (xri[1, :F0, :B * C].astype(jnp.float32)
              .reshape(F0, B, C).transpose(1, 0, 2))
        return out, (xr, xi, mask_bf)
    return out


if __name__ == "__main__":
    B, N, dim = 2, 16, 64            # dim must be 64 (module reshapes to 64)
    key = jax.random.PRNGKey(0)
    k1, k2, k3, k4 = jax.random.split(key, 4)

    # Deterministic "parameters" (shapes from __init__)
    complex_weight_high = jax.random.normal(k1, (dim, 2), jnp.float32) * 0.02
    complex_weight = jax.random.normal(k2, (dim, 2), jnp.float32) * 0.02
    threshold_param = jax.random.uniform(k3, (1,), jnp.float32) * 0.5

    x_in = jax.random.normal(k4, (B, N, dim), jnp.float32)

    fn = jax.jit(functools.partial(feature_extraction_block,
                                   adaptive_filter=True,
                                   return_internals=True))
    out, (xr, xi, mask) = fn(x_in, complex_weight, complex_weight_high,
                             threshold_param)
    out = jax.block_until_ready(out)

    # --- correctness checks: reference uses the kernel's own mask so the
    #     threshold decision cannot flake; MXU inputs are bf16, so compare the
    #     spectrum against rfft of the bf16-rounded input ----------------------
    xb = x_in.astype(jnp.bfloat16).astype(jnp.float32)
    xfft_ref = jnp.fft.rfft(xb, axis=1, norm="ortho")
    assert bool(jnp.allclose(xr, jnp.real(xfft_ref), rtol=2e-2, atol=2e-2))
    assert bool(jnp.allclose(xi, jnp.imag(xfft_ref), rtol=2e-2, atol=2e-2))

    w = complex_weight[:, 0] + 1j * complex_weight[:, 1]
    wh = complex_weight_high[:, 0] + 1j * complex_weight_high[:, 1]
    y_ref = (xr + 1j * xi) * (w[None, None, :] + mask[..., None] * wh[None, None, :])
    out_ref = jnp.fft.irfft(y_ref, n=N, axis=1, norm="ortho")
    assert bool(jnp.allclose(out, out_ref, rtol=5e-2, atol=5e-3))

    print("KERNEL_OK")
</pallas_src>

<mosaic_0001>
module attributes {stable_mosaic.version = 11 : i64} {
  func.func @_spectral_weight_kernel(%arg0: i32, %arg1: memref<2x16x256xbf16, #tpu.memory_space<vmem>>, %arg2: memref<1x16x4xf32, #tpu.memory_space<vmem>>, %arg3: memref<4x256xf32, #tpu.memory_space<vmem>>, %arg4: memref<4x256xf32, #tpu.memory_space<vmem>>, %arg5: memref<2x16x256xbf16, #tpu.memory_space<vmem>>) attributes {dimension_semantics = [#tpu.dimension_semantics<parallel>], iteration_bounds = array<i64: 1>, scalar_prefetch = 0 : i64, scratch_operands = 0 : i64, tpu.core_type = #tpu.core_type<tc>, window_params = [{transform_indices = @transform_0, window_bounds = array<i64: 2, 16, 256>}, {transform_indices = @transform_1, window_bounds = array<i64: 1, 16, 4>}, {transform_indices = @transform_2, window_bounds = array<i64: 4, 256>}, {pipeline_mode = #tpu.pipeline_mode<synchronous>, transform_indices = @transform_3, window_bounds = array<i64: 4, 256>}, {transform_indices = @transform_4, window_bounds = array<i64: 2, 16, 256>}]} {
    %c0 = arith.constant 0 : index
    %c0_0 = arith.constant 0 : index
    %c0_1 = arith.constant 0 : index
    %0 = vector.load %arg1[%c0, %c0_0, %c0_1] : memref<2x16x256xbf16, #tpu.memory_space<vmem>>, vector<1x16x256xbf16>
    %1 = vector.shape_cast %0 : vector<1x16x256xbf16> to vector<16x256xbf16>
    %2 = arith.extf %1 : vector<16x256xbf16> to vector<16x256xf32>
    %c1 = arith.constant 1 : index
    %c0_2 = arith.constant 0 : index
    %c0_3 = arith.constant 0 : index
    %3 = vector.load %arg1[%c1, %c0_2, %c0_3] : memref<2x16x256xbf16, #tpu.memory_space<vmem>>, vector<1x16x256xbf16>
    %4 = vector.shape_cast %3 : vector<1x16x256xbf16> to vector<16x256xbf16>
    %5 = arith.extf %4 : vector<16x256xbf16> to vector<16x256xf32>
    %c0_4 = arith.constant 0 : index
    %c0_5 = arith.constant 0 : index
    %c0_6 = arith.constant 0 : index
    %6 = vector.load %arg2[%c0_4, %c0_5, %c0_6] : memref<1x16x4xf32, #tpu.memory_space<vmem>>, vector<1x16x4xf32>
    %7 = vector.shape_cast %6 : vector<1x16x4xf32> to vector<16x4xf32>
    %c0_7 = arith.constant 0 : index
    %c0_8 = arith.constant 0 : index
    %8 = vector.load %arg4[%c0_7, %c0_8] : memref<4x256xf32, #tpu.memory_space<vmem>>, vector<4x256xf32>
    %cst = arith.constant dense<0.000000e+00> : vector<16x256xf32>
    %9 = tpu.matmul %7, %8, %cst {dimension_numbers = #tpu.dot_dimension_numbers<[1], [0], [0], [1], [0, 0, 1, 1], [], []>} : vector<16x4xf32>, vector<4x256xf32>, vector<16x256xf32> -> vector<16x256xf32>
    %c0_9 = arith.constant 0 : index
    %c0_10 = arith.constant 0 : index
    %10 = vector.load %arg3[%c0_9, %c0_10] : memref<4x256xf32, #tpu.memory_space<vmem>>, vector<1x256xf32>
    %c1_11 = arith.constant 1 : index
    %c0_12 = arith.constant 0 : index
    %11 = vector.load %arg3[%c1_11, %c0_12] : memref<4x256xf32, #tpu.memory_space<vmem>>, vector<1x256xf32>
    %c2 = arith.constant 2 : index
    %c0_13 = arith.constant 0 : index
    %12 = vector.load %arg3[%c2, %c0_13] : memref<4x256xf32, #tpu.memory_space<vmem>>, vector<1x256xf32>
    %c3 = arith.constant 3 : index
    %c0_14 = arith.constant 0 : index
    %13 = vector.load %arg3[%c3, %c0_14] : memref<4x256xf32, #tpu.memory_space<vmem>>, vector<1x256xf32>
    %14 = vector.broadcast %12 : vector<1x256xf32> to vector<16x256xf32>
    %15 = arith.mulf %9, %14 : vector<16x256xf32>
    %16 = vector.broadcast %10 : vector<1x256xf32> to vector<16x256xf32>
    %17 = arith.addf %16, %15 : vector<16x256xf32>
    %18 = vector.broadcast %13 : vector<1x256xf32> to vector<16x256xf32>
    %19 = arith.mulf %9, %18 : vector<16x256xf32>
    %20 = vector.broadcast %11 : vector<1x256xf32> to vector<16x256xf32>
    %21 = arith.addf %20, %19 : vector<16x256xf32>
    %22 = arith.mulf %2, %17 : vector<16x256xf32>
    %23 = arith.mulf %5, %21 : vector<16x256xf32>
    %24 = arith.subf %22, %23 : vector<16x256xf32>
    %25 = arith.truncf %24 : vector<16x256xf32> to vector<16x256xbf16>
    %c0_15 = arith.constant 0 : index
    %c0_16 = arith.constant 0 : index
    %c0_17 = arith.constant 0 : index
    %26 = vector.load %arg5[%c0_15, %c0_16, %c0_17] : memref<2x16x256xbf16, #tpu.memory_space<vmem>>, vector<1x16x256xbf16>
    %27 = vector.shape_cast %26 : vector<1x16x256xbf16> to vector<16x256xbf16>
    %28 = vector.shape_cast %25 : vector<16x256xbf16> to vector<1x16x256xbf16>
    tpu.vector_store %arg5[%c0_15, %c0_16, %c0_17], %28 {strides = array<i32>} : memref<2x16x256xbf16, #tpu.memory_space<vmem>>, vector<1x16x256xbf16>,
    %29 = arith.mulf %2, %21 : vector<16x256xf32>
    %30 = arith.mulf %5, %17 : vector<16x256xf32>
    %31 = arith.addf %29, %30 : vector<16x256xf32>
    %32 = arith.truncf %31 : vector<16x256xf32> to vector<16x256xbf16>
    %c1_18 = arith.constant 1 : index
    %c0_19 = arith.constant 0 : index
    %c0_20 = arith.constant 0 : index
    %33 = vector.load %arg5[%c1_18, %c0_19, %c0_20] : memref<2x16x256xbf16, #tpu.memory_space<vmem>>, vector<1x16x256xbf16>
    %34 = vector.shape_cast %33 : vector<1x16x256xbf16> to vector<16x256xbf16>
    %35 = vector.shape_cast %32 : vector<16x256xbf16> to vector<1x16x256xbf16>
    tpu.vector_store %arg5[%c1_18, %c0_19, %c0_20], %35 {strides = array<i32>} : memref<2x16x256xbf16, #tpu.memory_space<vmem>>, vector<1x16x256xbf16>,
    return
  }
  func.func @transform_0(%arg0: i32) -> (i32, i32, i32) {
    %c0_i32 = arith.constant 0 : i32
    %c0_i32_0 = arith.constant 0 : i32
    %c0_i32_1 = arith.constant 0 : i32
    return %c0_i32, %c0_i32_0, %arg0 : i32, i32, i32
  }
  func.func @transform_1(%arg0: i32) -> (i32, i32, i32) {
    %c0_i32 = arith.constant 0 : i32
    %c0_i32_0 = arith.constant 0 : i32
    %c0_i32_1 = arith.constant 0 : i32
    return %arg0, %c0_i32, %c0_i32_0 : i32, i32, i32
  }
  func.func @transform_2(%arg0: i32) -> (i32, i32) {
    %c0_i32 = arith.constant 0 : i32
    %c0_i32_0 = arith.constant 0 : i32
    return %c0_i32, %arg0 : i32, i32
  }
  func.func @transform_3(%arg0: i32) -> (i32, i32) {
    %c0_i32 = arith.constant 0 : i32
    %c0_i32_0 = arith.constant 0 : i32
    %c0_i32_1 = arith.constant 0 : i32
    return %c0_i32, %c0_i32_0 : i32, i32
  }
  func.func @transform_4(%arg0: i32) -> (i32, i32, i32) {
    %c0_i32 = arith.constant 0 : i32
    %c0_i32_0 = arith.constant 0 : i32
    %c0_i32_1 = arith.constant 0 : i32
    return %c0_i32, %c0_i32_0, %arg0 : i32, i32, i32
  }
}

module attributes {stable_mosaic.version = 11 : i64} {
  func.func @_rfft_energy_kernel(%arg0: i32, %arg1: i32, %arg2: memref<128x256xbf16, #tpu.memory_space<vmem>>, %arg3: memref<2x16x128xbf16, #tpu.memory_space<vmem>>, %arg4: memref<256x4xf32, #tpu.memory_space<vmem>>, %arg5: memref<2x16x256xbf16, #tpu.memory_space<vmem>>, %arg6: memref<1x16x4xf32, #tpu.memory_space<vmem>>) attributes {dimension_semantics = [#tpu.dimension_semantics<parallel>, #tpu.dimension_semantics<parallel>], iteration_bounds = array<i64: 1, 1>, scalar_prefetch = 0 : i64, scratch_operands = 0 : i64, tpu.core_type = #tpu.core_type<tc>, window_params = [{transform_indices = @transform_0, window_bounds = array<i64: 128, 256>}, {transform_indices = @transform_1, window_bounds = array<i64: 2, 16, 128>}, {pipeline_mode = #tpu.pipeline_mode<synchronous>, transform_indices = @transform_2, window_bounds = array<i64: 256, 4>}, {transform_indices = @transform_3, window_bounds = array<i64: 2, 16, 256>}, {transform_indices = @transform_4, window_bounds = array<i64: 1, 16, 4>}]} {
    %c0 = arith.constant 0 : index
    %c0_0 = arith.constant 0 : index
    %0 = vector.load %arg2[%c0, %c0_0] : memref<128x256xbf16, #tpu.memory_space<vmem>>, vector<128x256xbf16>
    %c0_1 = arith.constant 0 : index
    %c0_2 = arith.constant 0 : index
    %c0_3 = arith.constant 0 : index
    %1 = vector.load %arg3[%c0_1, %c0_2, %c0_3] : memref<2x16x128xbf16, #tpu.memory_space<vmem>>, vector<1x16x128xbf16>
    %2 = vector.shape_cast %1 : vector<1x16x128xbf16> to vector<16x128xbf16>
    %cst = arith.constant dense<0.000000e+00> : vector<16x256xf32>
    %3 = tpu.matmul %2, %0, %cst {dimension_numbers = #tpu.dot_dimension_numbers<[1], [0], [0], [1], [0, 0, 1, 1], [], []>} : vector<16x128xbf16>, vector<128x256xbf16>, vector<16x256xf32> -> vector<16x256xf32>
    %c1 = arith.constant 1 : index
    %c0_4 = arith.constant 0 : index
    %c0_5 = arith.constant 0 : index
    %4 = vector.load %arg3[%c1, %c0_4, %c0_5] : memref<2x16x128xbf16, #tpu.memory_space<vmem>>, vector<1x16x128xbf16>
    %5 = vector.shape_cast %4 : vector<1x16x128xbf16> to vector<16x128xbf16>
    %cst_6 = arith.constant dense<0.000000e+00> : vector<16x256xf32>
    %6 = tpu.matmul %5, %0, %cst_6 {dimension_numbers = #tpu.dot_dimension_numbers<[1], [0], [0], [1], [0, 0, 1, 1], [], []>} : vector<16x128xbf16>, vector<128x256xbf16>, vector<16x256xf32> -> vector<16x256xf32>
    %7 = arith.mulf %3, %3 : vector<16x256xf32>
    %8 = arith.mulf %6, %6 : vector<16x256xf32>
    %9 = arith.addf %7, %8 : vector<16x256xf32>
    %c0_7 = arith.constant 0 : index
    %c0_8 = arith.constant 0 : index
    %10 = vector.load %arg4[%c0_7, %c0_8] : memref<256x4xf32, #tpu.memory_space<vmem>>, vector<256x4xf32>
    %cst_9 = arith.constant dense<0.000000e+00> : vector<16x4xf32>
    %11 = tpu.matmul %9, %10, %cst_9 {dimension_numbers = #tpu.dot_dimension_numbers<[1], [0], [0], [1], [0, 0, 1, 1], [], []>} : vector<16x256xf32>, vector<256x4xf32>, vector<16x4xf32> -> vector<16x4xf32>
    %c0_10 = arith.constant 0 : index
    %c0_11 = arith.constant 0 : index
    %c0_12 = arith.constant 0 : index
    %12 = vector.load %arg6[%c0_10, %c0_11, %c0_12] : memref<1x16x4xf32, #tpu.memory_space<vmem>>, vector<1x16x4xf32>
    %13 = vector.shape_cast %12 : vector<1x16x4xf32> to vector<16x4xf32>
    %14 = vector.shape_cast %11 : vector<16x4xf32> to vector<1x16x4xf32>
    tpu.vector_store %arg6[%c0_10, %c0_11, %c0_12], %14 {strides = array<i32>} : memref<1x16x4xf32, #tpu.memory_space<vmem>>, vector<1x16x4xf32>,
    %15 = arith.truncf %3 : vector<16x256xf32> to vector<16x256xbf16>
    %c0_13 = arith.constant 0 : index
    %c0_14 = arith.constant 0 : index
    %c0_15 = arith.constant 0 : index
    %16 = vector.load %arg5[%c0_13, %c0_14, %c0_15] : memref<2x16x256xbf16, #tpu.memory_space<vmem>>, vector<1x16x256xbf16>
    %17 = vector.shape_cast %16 : vector<1x16x256xbf16> to vector<16x256xbf16>
    %18 = vector.shape_cast %15 : vector<16x256xbf16> to vector<1x16x256xbf16>
    tpu.vector_store %arg5[%c0_13, %c0_14, %c0_15], %18 {strides = array<i32>} : memref<2x16x256xbf16, #tpu.memory_space<vmem>>, vector<1x16x256xbf16>,
    %19 = arith.truncf %6 : vector<16x256xf32> to vector<16x256xbf16>
    %c1_16 = arith.constant 1 : index
    %c0_17 = arith.constant 0 : index
    %c0_18 = arith.constant 0 : index
    %20 = vector.load %arg5[%c1_16, %c0_17, %c0_18] : memref<2x16x256xbf16, #tpu.memory_space<vmem>>, vector<1x16x256xbf16>
    %21 = vector.shape_cast %20 : vector<1x16x256xbf16> to vector<16x256xbf16>
    %22 = vector.shape_cast %19 : vector<16x256xbf16> to vector<1x16x256xbf16>
    tpu.vector_store %arg5[%c1_16, %c0_17, %c0_18], %22 {strides = array<i32>} : memref<2x16x256xbf16, #tpu.memory_space<vmem>>, vector<1x16x256xbf16>,
    return
  }
  func.func @transform_0(%arg0: i32, %arg1: i32) -> (i32, i32) {
    %c0_i32 = arith.constant 0 : i32
    %c0_i32_0 = arith.constant 0 : i32
    return %c0_i32, %arg0 : i32, i32
  }
  func.func @transform_1(%arg0: i32, %arg1: i32) -> (i32, i32, i32) {
    %c0_i32 = arith.constant 0 : i32
    %c0_i32_0 = arith.constant 0 : i32
    %c0_i32_1 = arith.constant 0 : i32
    return %c0_i32, %arg1, %c0_i32_0 : i32, i32, i32
  }
  func.func @transform_2(%arg0: i32, %arg1: i32) -> (i32, i32) {
    %c0_i32 = arith.constant 0 : i32
    %c0_i32_0 = arith.constant 0 : i32
    %c0_i32_1 = arith.constant 0 : i32
    return %c0_i32, %c0_i32_0 : i32, i32
  }
  func.func @transform_3(%arg0: i32, %arg1: i32) -> (i32, i32, i32) {
    %c0_i32 = arith.constant 0 : i32
    %c0_i32_0 = arith.constant 0 : i32
    return %c0_i32, %arg1, %arg0 : i32, i32, i32
  }
  func.func @transform_4(%arg0: i32, %arg1: i32) -> (i32, i32, i32) {
    %c0_i32 = arith.constant 0 : i32
    %c0_i32_0 = arith.constant 0 : i32
    return %arg0, %arg1, %c0_i32 : i32, i32, i32
  }
}

module attributes {stable_mosaic.version = 11 : i64} {
  func.func @_irfft_kernel(%arg0: i32, %arg1: i32, %arg2: memref<2x128x16xbf16, #tpu.memory_space<vmem>>, %arg3: memref<2x16x256xbf16, #tpu.memory_space<vmem>>, %arg4: memref<128x256xf32, #tpu.memory_space<vmem>>) attributes {dimension_semantics = [#tpu.dimension_semantics<parallel>, #tpu.dimension_semantics<parallel>], iteration_bounds = array<i64: 1, 1>, scalar_prefetch = 0 : i64, scratch_operands = 0 : i64, tpu.core_type = #tpu.core_type<tc>, window_params = [{transform_indices = @transform_0, window_bounds = array<i64: 2, 128, 16>}, {transform_indices = @transform_1, window_bounds = array<i64: 2, 16, 256>}, {transform_indices = @transform_2, window_bounds = array<i64: 128, 256>}]} {
    %c0 = arith.constant 0 : index
    %c0_0 = arith.constant 0 : index
    %c0_1 = arith.constant 0 : index
    %0 = vector.load %arg2[%c0, %c0_0, %c0_1] : memref<2x128x16xbf16, #tpu.memory_space<vmem>>, vector<1x128x16xbf16>
    %1 = vector.shape_cast %0 : vector<1x128x16xbf16> to vector<128x16xbf16>
    %c0_2 = arith.constant 0 : index
    %c0_3 = arith.constant 0 : index
    %c0_4 = arith.constant 0 : index
    %2 = vector.load %arg3[%c0_2, %c0_3, %c0_4] : memref<2x16x256xbf16, #tpu.memory_space<vmem>>, vector<1x16x256xbf16>
    %3 = vector.shape_cast %2 : vector<1x16x256xbf16> to vector<16x256xbf16>
    %cst = arith.constant dense<0.000000e+00> : vector<128x256xf32>
    %4 = tpu.matmul %1, %3, %cst {dimension_numbers = #tpu.dot_dimension_numbers<[1], [0], [0], [1], [0, 0, 1, 1], [], []>} : vector<128x16xbf16>, vector<16x256xbf16>, vector<128x256xf32> -> vector<128x256xf32>
    %c1 = arith.constant 1 : index
    %c0_5 = arith.constant 0 : index
    %c0_6 = arith.constant 0 : index
    %5 = vector.load %arg2[%c1, %c0_5, %c0_6] : memref<2x128x16xbf16, #tpu.memory_space<vmem>>, vector<1x128x16xbf16>
    %6 = vector.shape_cast %5 : vector<1x128x16xbf16> to vector<128x16xbf16>
    %c1_7 = arith.constant 1 : index
    %c0_8 = arith.constant 0 : index
    %c0_9 = arith.constant 0 : index
    %7 = vector.load %arg3[%c1_7, %c0_8, %c0_9] : memref<2x16x256xbf16, #tpu.memory_space<vmem>>, vector<1x16x256xbf16>
    %8 = vector.shape_cast %7 : vector<1x16x256xbf16> to vector<16x256xbf16>
    %cst_10 = arith.constant dense<0.000000e+00> : vector<128x256xf32>
    %9 = tpu.matmul %6, %8, %cst_10 {dimension_numbers = #tpu.dot_dimension_numbers<[1], [0], [0], [1], [0, 0, 1, 1], [], []>} : vector<128x16xbf16>, vector<16x256xbf16>, vector<128x256xf32> -> vector<128x256xf32>
    %10 = arith.addf %4, %9 : vector<128x256xf32>
    %c0_11 = arith.constant 0 : index
    %c0_12 = arith.constant 0 : index
    %11 = vector.load %arg4[%c0_11, %c0_12] : memref<128x256xf32, #tpu.memory_space<vmem>>, vector<128x256xf32>
    tpu.vector_store %arg4[%c0_11, %c0_12], %10 {strides = array<i32>} : memref<128x256xf32, #tpu.memory_space<vmem>>, vector<128x256xf32>,
    return
  }
  func.func @transform_0(%arg0: i32, %arg1: i32) -> (i32, i32, i32) {
    %c0_i32 = arith.constant 0 : i32
    %c0_i32_0 = arith.constant 0 : i32
    %c0_i32_1 = arith.constant 0 : i32
    return %c0_i32, %arg1, %c0_i32_0 : i32, i32, i32
  }
  func.func @transform_1(%arg0: i32, %arg1: i32) -> (i32, i32, i32) {
    %c0_i32 = arith.constant 0 : i32
    %c0_i32_0 = arith.constant 0 : i32
    %c0_i32_1 = arith.constant 0 : i32
    return %c0_i32, %c0_i32_0, %arg0 : i32, i32, i32
  }
  func.func @transform_2(%arg0: i32, %arg1: i32) -> (i32, i32) {
    %c0_i32 = arith.constant 0 : i32
    return %arg1, %arg0 : i32, i32
  }
}

</mosaic_0001>

<llo_original>
// kernel: tile.9
$region0: #{tile.9}
  %s0 = inlined_call_operand.vmem [shape: f32[4,4,64], index: 0, kind: input, shape index: {}]
  %s1 = inlined_call_operand.vmem [shape: f32[4,256], index: 1, kind: output, shape index: {}]
  $region1: #{tile.9} parent=0
    #allocation0 [shape = 'u8[8192]{0}', space=vmem, size = 0x2000, scoped, tag = 'scoped mem for output reshape']
    #allocation1 [shape = 'u8[16384]{0}', space=vmem, size = 0x4000, scoped, tag = 'scoped mem for input reshape']
    %s3 = sshllo.u32 0, 4
    %s4 = smul.addr 4, 3
    %s5 = scalar_lea.vmem %s0, %s4
    %v6 = vld [vmem:[%s5] sm:%s3]
    %s7 = scalar_lea.vmem [#allocation1], 24
    %8 = vst [vmem:[%s7] sm:%s3] %v6
    %s9 = smul.addr 4, 2
    %s10 = scalar_lea.vmem %s0, %s9
    %v11 = vld [vmem:[%s10] sm:%s3]
    %s12 = scalar_lea.vmem [#allocation1], 16
    %13 = vst [vmem:[%s12] sm:%s3] %v11
    %s14 = scalar_lea.vmem %s0, 4
    %v15 = vld [vmem:[%s14] sm:%s3]
    %s16 = scalar_lea.vmem [#allocation1], 8
    %17 = vst [vmem:[%s16] sm:%s3] %v15
    %v18 = vld [vmem:[%s0] sm:%s3]
    %19 = vst [vmem:[#allocation1] sm:%s3] %v18
    %s20 = smov 3
    %v21 = vld [vmem:[#allocation1] ss:$2 sm:%s20]
    %vm22 = vcmask 523264
    %23 = vst.msk [vmem:[#allocation0] ss:$8 sm:$0x3] %vm22, %v21
    %s24 = scalar_lea.vmem [#allocation1], 8
    %s25 = smov 3
    %v26 = vld [vmem:[%s24] ss:$2 sm:%s25]
    %vm27 = vcmask 523264
    %s28 = scalar_lea.vmem [#allocation0], 1
    %29 = vst.msk [vmem:[%s28] ss:$8 sm:$0x3] %vm27, %v26
    %s30 = scalar_lea.vmem [#allocation1], 16
    %s31 = smov 3
    %v32 = vld [vmem:[%s30] ss:$2 sm:%s31]
    %vm33 = vcmask 523264
    %s34 = scalar_lea.vmem [#allocation0], 2
    %35 = vst.msk [vmem:[%s34] ss:$8 sm:$0x3] %vm33, %v32
    %s36 = scalar_lea.vmem [#allocation1], 24
    %s37 = smov 3
    %v38 = vld [vmem:[%s36] ss:$2 sm:%s37]
    %vm39 = vcmask 523264
    %s40 = scalar_lea.vmem [#allocation0], 3
    %41 = vst.msk [vmem:[%s40] ss:$8 sm:$0x3] %vm39, %v38
    %s42 = scalar_lea.vmem [#allocation1], 1
    %v43 = vld [vmem:[%s42] ss:$8 sm:$0xf]
    %s44 = scalar_lea.vmem [#allocation1], 4294967267
    %v45 = vld [vmem:[%s44] ss:$8 sm:$0xf0]
    %vm46 = vcmask 1047556
    %v47 = vsel %vm46, %v45, %v43
    %48 = vrot.lane.b32.xlu0 %v47, 64
    %v49 = vpop.permute.xlu0 %48
    %vm50 = vcmask 1048064
    %51 = vst.msk [vmem:[#allocation0] sm:$0xf] %vm50, %v49
    %s52 = scalar_lea.vmem [#allocation0], 4
    %53 = vst.msk [vmem:[%s52] sm:$0xf0] %vm50, %v49
    %s55 = sshllo.u32 0, 4
    %v57 = vld [vmem:[#allocation0] sm:%s55]
    %s58 = sshllo.u32 0, 4
    %59 = vst [vmem:[%s1] sm:%s58] %v57
    %s60 = scalar_lea.vmem [#allocation0], 8
    %v61 = vld [vmem:[%s60] sm:%s55]
    %s62 = sshllo.u32 0, 4
    %s63 = scalar_lea.vmem %s1, 4
    %64 = vst [vmem:[%s63] sm:%s62] %v61

// kernel: feature_extraction_block.4
$region0: #{feature_extraction_block.4}
  #allocation0 [shape = 'u32[]', space=smem, size = 0x4, offset = 0x4, fixed_abs, tag = 'smem constant byte address 0x4 - core index']
  #allocation1 [shape = 'u32[144,128]{1,0:T(1,128)}', space=vmem, size = 0x12000, scoped, tag = 'internal scratch']
  %s0 = inlined_call_operand.vmem [shape: bf16[2,16,256], index: 0, kind: input, shape index: {}]
  %s1 = inlined_call_operand.vmem [shape: f32[1,16,4], index: 1, kind: input, shape index: {}]
  %s2 = inlined_call_operand.vmem [shape: f32[4,256], index: 2, kind: input, shape index: {}]
  %s3 = inlined_call_operand.vmem [shape: f32[4,256], index: 3, kind: input, shape index: {}]
  %s4 = inlined_call_operand.vmem [shape: bf16[2,16,256], index: 4, kind: output, shape index: {}]
  %s5 = sld [smem:[#allocation0]]
  $region26: #{feature_extraction_block.4} parent=0
    _
  %s7 = ssub.s32 1, %s5
  %s8 = scalar_select 0, %s7, %s5
  // Predicated region
  $region2: #{feature_extraction_block.4} parent=0 // pred_check
    _
  $region3: #{feature_extraction_block.4} parent=0 // pred_check_branch
    %10 = sbr.rel (0) target = $region5
  $region4: #{feature_extraction_block.4} parent=0 // pred_region
    _
  $region5: #{feature_extraction_block.4} parent=0 // pred_fallthru
    _
  // Predicated region
  $region6: #{feature_extraction_block.4} parent=0 // pred_check
    _
  $region7: #{feature_extraction_block.4} parent=0 // pred_check_branch
    %12 = sbr.rel (0) target = $region9
  $region8: #{feature_extraction_block.4} parent=0 // pred_region
    _
  $region9: #{feature_extraction_block.4} parent=0 // pred_fallthru
    _
  // Predicated region
  $region10: #{feature_extraction_block.4} parent=0 // pred_check
    _
  $region11: #{feature_extraction_block.4} parent=0 // pred_check_branch
    %14 = sbr.rel (0) target = $region13
  $region12: #{feature_extraction_block.4} parent=0 // pred_region
    _
  $region13: #{feature_extraction_block.4} parent=0 // pred_fallthru
    _
  // Predicated region
  $region14: #{feature_extraction_block.4} parent=0 // pred_check
    _
  $region15: #{feature_extraction_block.4} parent=0 // pred_check_branch
    %16 = sbr.rel (0) target = $region17
  $region16: #{feature_extraction_block.4} parent=0 // pred_region
    _
  $region17: #{feature_extraction_block.4} parent=0 // pred_fallthru
    _
  %v17 = vld [vmem:[%s0] sm:$0xff]
  %v18 = vld [vmem:[%s0 + $0x8] sm:$0xff]
  %v19 = vunpack.c.l.bf16 %v17
  %v20 = vunpack.c.h.bf16 %v17
  %v21 = vunpack.c.l.bf16 %v18
  %v22 = vunpack.c.h.bf16 %v18
  %s23 = scalar_lea.vmem %s0, 16
  %v24 = vld [vmem:[%s23] sm:$0xff]
  %v25 = vld [vmem:[%s23 + $0x8] sm:$0xff]
  %v26 = vunpack.c.l.bf16 %v24
  %v27 = vunpack.c.h.bf16 %v24
  %v28 = vunpack.c.l.bf16 %v25
  %v29 = vunpack.c.h.bf16 %v25
  %v30 = vld [vmem:[%s1] sm:$0xff]
  %v31 = vld [vmem:[%s1 + $0x8] sm:$0xff]
  %v32 = vld [vmem:[%s3] sm:$0xff]
  %v34 = vcombine.high %v32, %v32
  %vm35 = vcmask 31744
  %v37 = vsel %vm35, %v30, 0
  %v40 = vsel %vm35, %v31, 0
  %vm42 = vcmask 1043456
  %v43 = vsel %vm42, %v32, 0
  %v45 = vsel %vm42, %v34, 0
  %47 = vmatprep.subr.mxu0 %v45
  %48 = vmatpush1.msra.mxu0 %v43
  %49 = vmatprep.subr.mxu0 0.0
  %50 = vmatpush1.msra.mxu0 0.0
  %51 = vmatprep.subr.mxu0 0.0
  %52 = vmatpush1.msra.mxu0 0.0
  %53 = vmatprep.subr.mxu0 0.0
  %54 = vmatpush1.msra.mxu0 0.0
  %55 = vmatprep.subr.mxu0 0.0
  %56 = vmatpush1.msra.mxu0 0.0
  %57 = vmatprep.subr.mxu0 0.0
  %58 = vmatpush1.msra.mxu0 0.0
  %59 = vmatprep.subr.mxu0 0.0
  %60 = vmatpush1.msra.mxu0 0.0
  %61 = vmatprep.subr.mxu0 0.0
  %62 = vmatpush1.msra.mxu0 0.0
  %63 = vmatprep.subr.mxu0 0.0
  %64 = vmatpush1.msra.mxu0 0.0
  %65 = vmatprep.subr.mxu0 0.0
  %66 = vmatpush1.msra.mxu0 0.0
  %67 = vmatprep.subr.mxu0 0.0
  %68 = vmatpush1.msra.mxu0 0.0
  %69 = vmatprep.subr.mxu0 0.0
  %70 = vmatpush1.msra.mxu0 0.0
  %71 = vmatprep.subr.mxu0 0.0
  %72 = vmatpush1.msra.mxu0 0.0
  %73 = vmatprep.subr.mxu0 0.0
  %74 = vmatpush1.msra.mxu0 0.0
  %75 = vmatprep.subr.mxu0 0.0
  %76 = vmatpush1.msra.mxu0 0.0
  %77 = vmatprep.subr.mxu0 0.0
  %78 = vmatpush1.msra.mxu0 0.0
  %79 = vmatprep.subr.mxu0 0.0
  %80 = vmatpush1.msra.mxu0 0.0
  %81 = vmatprep.subr.mxu0 0.0
  %82 = vmatpush1.msra.mxu0 0.0
  %83 = vmatprep.subr.mxu0 0.0
  %84 = vmatpush1.msra.mxu0 0.0
  %85 = vmatprep.subr.mxu0 0.0
  %86 = vmatpush1.msra.mxu0 0.0
  %87 = vmatprep.subr.mxu0 0.0
  %88 = vmatpush1.msra.mxu0 0.0
  %89 = vmatprep.subr.mxu0 0.0
  %90 = vmatpush1.msra.mxu0 0.0
  %91 = vmatprep.subr.mxu0 0.0
  %92 = vmatpush1.msra.mxu0 0.0
  %93 = vmatprep.subr.mxu0 0.0
  %94 = vmatpush1.msra.mxu0 0.0
  %95 = vmatprep.subr.mxu0 0.0
  %96 = vmatpush1.msra.mxu0 0.0
  %97 = vmatprep.subr.mxu0 0.0
  %98 = vmatpush1.msra.mxu0 0.0
  %99 = vmatprep.subr.mxu0 0.0
  %100 = vmatpush1.msra.mxu0 0.0
  %101 = vmatprep.subr.mxu0 0.0
  %102 = vmatpush1.msra.mxu0 0.0
  %103 = vmatprep.subr.mxu0 0.0
  %104 = vmatpush1.msra.mxu0 0.0
  %105 = vmatprep.subr.mxu0 0.0
  %106 = vmatpush1.msra.mxu0 0.0
  %107 = vmatprep.subr.mxu0 0.0
  %108 = vmatpush1.msra.mxu0 0.0
  %109 = vmatprep.subr.mxu0 0.0
  %110 = vmatpush1.msra.mxu0 0.0
  %111 = vmatprep.mubr.f32.mxu0 0.0
  %112 = vmatmul.mubr.f32.gmra.mrb[0].mxu0 %v37
  %v113 = vpop.f32.mrb[0].mxu0
  %v114 = vadd.f32 0.0, %v113
  %v115 = vpop.f32.mrb[0].mxu0
  %v116 = vadd.f32 0.0, %v115
  %117 = vmatprep.mubr.f32.mxu0 0.0
  %118 = vmatmul.mubr.f32.gmra.mrb[0].mxu0 %v40
  %v119 = vpop.f32.mrb[0].mxu0
  %v120 = vadd.f32 0.0, %v119
  %v121 = vpop.f32.mrb[0].mxu0
  %v122 = vadd.f32 0.0, %v121
  %123 = vdwg.mxu0
  %v124 = vld [vmem:[%s2] ss:$4 sm:$0x3]
  %s125 = scalar_lea.vmem %s2, 1
  %v126 = vld [vmem:[%s125] ss:$4 sm:$0x3]
  %s127 = scalar_lea.vmem %s2, 2
  %v128 = vld [vmem:[%s127] ss:$4 sm:$0x3]
  %s129 = scalar_lea.vmem %s2, 3
  %v130 = vld [vmem:[%s129] ss:$4 sm:$0x3]
  %v132 = vlaneseq
  %v133 = vshrl.u32 %v132, 7
  %v134 = vsub.s32 0, %v133
  %v135 = vrot.slane %v128, %v134
  %v136 = vlaneseq
  %v137 = vshrl.u32 %v136, 7
  %v138 = vsub.s32 1, %v137
  %v139 = vrot.slane %v128, %v138
  %v142 = vmul.f32 %v114, %v135
  %v143 = vmul.f32 %v116, %v139
  %v144 = vmul.f32 %v120, %v135
  %v145 = vmul.f32 %v122, %v139
  %v147 = vlaneseq
  %v148 = vshrl.u32 %v147, 7
  %v149 = vsub.s32 0, %v148
  %v150 = vrot.slane %v124, %v149
  %v151 = vlaneseq
  %v152 = vshrl.u32 %v151, 7
  %v153 = vsub.s32 1, %v152
  %v154 = vrot.slane %v124, %v153
  %v157 = vadd.f32 %v150, %v142
  %v158 = vadd.f32 %v154, %v143
  %v159 = vadd.f32 %v150, %v144
  %v160 = vadd.f32 %v154, %v145
  %v162 = vlaneseq
  %v163 = vshrl.u32 %v162, 7
  %v164 = vsub.s32 0, %v163
  %v165 = vrot.slane %v130, %v164
  %v166 = vlaneseq
  %v167 = vshrl.u32 %v166, 7
  %v168 = vsub.s32 1, %v167
  %v169 = vrot.slane %v130, %v168
  %v172 = vmul.f32 %v114, %v165
  %v173 = vmul.f32 %v116, %v169
  %v174 = vmul.f32 %v120, %v165
  %v175 = vmul.f32 %v122, %v169
  %v177 = vlaneseq
  %v178 = vshrl.u32 %v177, 7
  %v179 = vsub.s32 0, %v178
  %v180 = vrot.slane %v126, %v179
  %v181 = vlaneseq
  %v182 = vshrl.u32 %v181, 7
  %v183 = vsub.s32 1, %v182
  %v184 = vrot.slane %v126, %v183
  %v187 = vadd.f32 %v180, %v172
  %v188 = vadd.f32 %v184, %v173
  %v189 = vadd.f32 %v180, %v174
  %v190 = vadd.f32 %v184, %v175
  %v191 = vmul.f32 %v19, %v157
  %v192 = vmul.f32 %v20, %v158
  %v193 = vmul.f32 %v21, %v159
  %v194 = vmul.f32 %v22, %v160
  %v195 = vmul.f32 %v26, %v187
  %v196 = vmul.f32 %v27, %v188
  %v197 = vmul.f32 %v28, %v189
  %v198 = vmul.f32 %v29, %v190
  %v199 = vsub.f32 %v191, %v195
  %v200 = vsub.f32 %v192, %v196
  %v201 = vsub.f32 %v193, %v197
  %v202 = vsub.f32 %v194, %v198
  %v203 = vpack.c.bf16 %v201, %v199
  %v204 = vpack.c.bf16 %v202, %v200
  %v207 = vunpack.c.l.b16 %v203
  %v208 = vunpack.c.l.b16 %v204
  %v209 = vunpack.c.h.b16 %v203
  %v210 = vunpack.c.h.b16 %v204
  %v211 = vpack.c.b16 %v208, %v207
  %v212 = vpack.c.b16 %v210, %v209
  %215 = vst [vmem:[%s4] sm:$0xff] %v211
  %216 = vst [vmem:[%s4 + $0x8] sm:$0xff] %v212
  %v217 = vmul.f32 %v19, %v187
  %v218 = vmul.f32 %v20, %v188
  %v219 = vmul.f32 %v21, %v189
  %v220 = vmul.f32 %v22, %v190
  %v221 = vmul.f32 %v26, %v157
  %v222 = vmul.f32 %v27, %v158
  %v223 = vmul.f32 %v28, %v159
  %v224 = vmul.f32 %v29, %v160
  %v225 = vadd.f32 %v217, %v221
  %v226 = vadd.f32 %v218, %v222
  %v227 = vadd.f32 %v219, %v223
  %v228 = vadd.f32 %v220, %v224
  %v229 = vpack.c.bf16 %v227, %v225
  %v230 = vpack.c.bf16 %v228, %v226
  %v233 = vunpack.c.l.b16 %v229
  %v234 = vunpack.c.l.b16 %v230
  %v235 = vunpack.c.h.b16 %v229
  %v236 = vunpack.c.h.b16 %v230
  %v237 = vpack.c.b16 %v234, %v233
  %v238 = vpack.c.b16 %v236, %v235
  %s241 = scalar_lea.vmem %s4, 16
  %242 = vst [vmem:[%s241] sm:$0xff] %v237
  %243 = vst [vmem:[%s241 + $0x8] sm:$0xff] %v238
  // Predicated region
  $region18: #{feature_extraction_block.4} parent=0 // pred_check
    _
  $region19: #{feature_extraction_block.4} parent=0 // pred_check_branch
    %245 = sbr.rel (0) target = $region21
  $region20: #{feature_extraction_block.4} parent=0 // pred_region
    _
  $region21: #{feature_extraction_block.4} parent=0 // pred_fallthru
    _
  // Predicated region
  $region22: #{feature_extraction_block.4} parent=0 // pred_check
    _
  $region23: #{feature_extraction_block.4} parent=0 // pred_check_branch
    %247 = sbr.rel (0) target = $region25
  $region24: #{feature_extraction_block.4} parent=0 // pred_region
    _
  $region25: #{feature_extraction_block.4} parent=0 // pred_fallthru
    _

// kernel: feature_extraction_block.3
$region0: #{feature_extraction_block.3}
  #allocation0 [shape = 'u32[]', space=smem, size = 0x4, offset = 0x4, fixed_abs, tag = 'smem constant byte address 0x4 - core index']
  #allocation1 [shape = 'u32[144,128]{1,0:T(1,128)}', space=vmem, size = 0x12000, scoped, tag = 'internal scratch']
  %s0 = inlined_call_operand.vmem [shape: bf16[128,256], index: 0, kind: input, shape index: {}]
  %s1 = inlined_call_operand.vmem [shape: bf16[2,16,128], index: 1, kind: input, shape index: {}]
  %s2 = inlined_call_operand.vmem [shape: f32[256,4], index: 2, kind: input, shape index: {}]
  %s3 = inlined_call_operand.vmem [shape: bf16[2,16,256], index: 3, kind: output, shape index: {0}]
  %s4 = inlined_call_operand.vmem [shape: f32[1,16,4], index: 4, kind: output, shape index: {1}]
  %5 = xla_tuple %s3, %s4
  %s6 = sld [smem:[#allocation0]]
  $region30: #{feature_extraction_block.3} parent=0
    _
  %s8 = ssub.s32 1, %s6
  %s9 = scalar_select 0, %s8, %s6
  // Predicated region
  $region2: #{feature_extraction_block.3} parent=0 // pred_check
    _
  $region3: #{feature_extraction_block.3} parent=0 // pred_check_branch
    %11 = sbr.rel (0) target = $region5
  $region4: #{feature_extraction_block.3} parent=0 // pred_region
    _
  $region5: #{feature_extraction_block.3} parent=0 // pred_fallthru
    _
  // Predicated region
  $region6: #{feature_extraction_block.3} parent=0 // pred_check
    _
  $region7: #{feature_extraction_block.3} parent=0 // pred_check_branch
    %13 = sbr.rel (0) target = $region9
  $region8: #{feature_extraction_block.3} parent=0 // pred_region
    _
  $region9: #{feature_extraction_block.3} parent=0 // pred_fallthru
    _
  // Predicated region
  $region10: #{feature_extraction_block.3} parent=0 // pred_check
    _
  $region11: #{feature_extraction_block.3} parent=0 // pred_check_branch
    %15 = sbr.rel (0) target = $region13
  $region12: #{feature_extraction_block.3} parent=0 // pred_region
    _
  $region13: #{feature_extraction_block.3} parent=0 // pred_fallthru
    _
  %v17 = vld [vmem:[%s0] sm:$0xff]
  %v18 = vld [vmem:[%s0 + $0x8] sm:$0xff]
  %v19 = vld [vmem:[%s0 + $0x10] sm:$0xff]
  %v20 = vld [vmem:[%s0 + $0x18] sm:$0xff]
  %v21 = vld [vmem:[%s0 + $0x20] sm:$0xff]
  %v22 = vld [vmem:[%s0 + $0x28] sm:$0xff]
  %v23 = vld [vmem:[%s0 + $0x30] sm:$0xff]
  %v24 = vld [vmem:[%s0 + $0x38] sm:$0xff]
  %v25 = vld [vmem:[%s0 + $0x40] sm:$0xff]
  %v26 = vld [vmem:[%s0 + $0x48] sm:$0xff]
  %v27 = vld [vmem:[%s0 + $0x50] sm:$0xff]
  %v28 = vld [vmem:[%s0 + $0x58] sm:$0xff]
  %v29 = vld [vmem:[%s0 + $0x60] sm:$0xff]
  %v30 = vld [vmem:[%s0 + $0x68] sm:$0xff]
  %v31 = vld [vmem:[%s0 + $0x70] sm:$0xff]
  %v32 = vld [vmem:[%s0 + $0x78] sm:$0xff]
  %v33 = vld [vmem:[%s1] sm:$0xf]
  %v34 = vld [vmem:[%s1 + $0x4] sm:$0xf]
  %v37 = vunpack.c.l.b16 %v33
  %v38 = vunpack.c.l.b16 %v34
  %v39 = vpack.c.b16 %v38, %v37
  %v57 = vunpack.c.l.b16 %v17
  %v58 = vunpack.c.h.b16 %v17
  %v59 = vunpack.c.l.b16 %v18
  %v60 = vunpack.c.h.b16 %v18
  %v61 = vunpack.c.l.b16 %v19
  %v62 = vunpack.c.h.b16 %v19
  %v63 = vunpack.c.l.b16 %v20
  %v64 = vunpack.c.h.b16 %v20
  %v65 = vunpack.c.l.b16 %v21
  %v66 = vunpack.c.h.b16 %v21
  %v67 = vunpack.c.l.b16 %v22
  %v68 = vunpack.c.h.b16 %v22
  %v69 = vunpack.c.l.b16 %v23
  %v70 = vunpack.c.h.b16 %v23
  %v71 = vunpack.c.l.b16 %v24
  %v72 = vunpack.c.h.b16 %v24
  %v73 = vunpack.c.l.b16 %v25
  %v74 = vunpack.c.h.b16 %v25
  %v75 = vunpack.c.l.b16 %v26
  %v76 = vunpack.c.h.b16 %v26
  %v77 = vunpack.c.l.b16 %v27
  %v78 = vunpack.c.h.b16 %v27
  %v79 = vunpack.c.l.b16 %v28
  %v80 = vunpack.c.h.b16 %v28
  %v81 = vunpack.c.l.b16 %v29
  %v82 = vunpack.c.h.b16 %v29
  %v83 = vunpack.c.l.b16 %v30
  %v84 = vunpack.c.h.b16 %v30
  %v85 = vunpack.c.l.b16 %v31
  %v86 = vunpack.c.h.b16 %v31
  %v87 = vunpack.c.l.b16 %v32
  %v88 = vunpack.c.h.b16 %v32
  %v89 = vpack.c.b16 %v59, %v57
  %v90 = vpack.c.b16 %v60, %v58
  %v91 = vpack.c.b16 %v63, %v61
  %v92 = vpack.c.b16 %v64, %v62
  %v93 = vpack.c.b16 %v67, %v65
  %v94 = vpack.c.b16 %v68, %v66
  %v95 = vpack.c.b16 %v71, %v69
  %v96 = vpack.c.b16 %v72, %v70
  %v97 = vpack.c.b16 %v75, %v73
  %v98 = vpack.c.b16 %v76, %v74
  %v99 = vpack.c.b16 %v79, %v77
  %v100 = vpack.c.b16 %v80, %v78
  %v101 = vpack.c.b16 %v83, %v81
  %v102 = vpack.c.b16 %v84, %v82
  %v103 = vpack.c.b16 %v87, %v85
  %v104 = vpack.c.b16 %v88, %v86
  %121 = vmatprep.subr.bf16.mxu0 %v90
  %122 = vmatpush1.bf16.msra.mxu0 %v89
  %123 = vmatprep.subr.bf16.mxu0 %v92
  %124 = vmatpush1.bf16.msra.mxu0 %v91
  %125 = vmatprep.subr.bf16.mxu0 %v94
  %126 = vmatpush1.bf16.msra.mxu0 %v93
  %127 = vmatprep.subr.bf16.mxu0 %v96
  %128 = vmatpush1.bf16.msra.mxu0 %v95
  %129 = vmatprep.subr.bf16.mxu0 %v98
  %130 = vmatpush1.bf16.msra.mxu0 %v97
  %131 = vmatprep.subr.bf16.mxu0 %v100
  %132 = vmatpush1.bf16.msra.mxu0 %v99
  %133 = vmatprep.subr.bf16.mxu0 %v102
  %134 = vmatpush1.bf16.msra.mxu0 %v101
  %135 = vmatprep.subr.bf16.mxu0 %v104
  %136 = vmatpush1.bf16.msra.mxu0 %v103
  %137 = vmatprep.subr.bf16.mxu0 0
  %138 = vmatpush1.bf16.msra.mxu0 0
  %139 = vmatprep.subr.bf16.mxu0 0
  %140 = vmatpush1.bf16.msra.mxu0 0
  %141 = vmatprep.subr.bf16.mxu0 0
  %142 = vmatpush1.bf16.msra.mxu0 0
  %143 = vmatprep.subr.bf16.mxu0 0
  %144 = vmatpush1.bf16.msra.mxu0 0
  %145 = vmatprep.subr.bf16.mxu0 0
  %146 = vmatpush1.bf16.msra.mxu0 0
  %147 = vmatprep.subr.bf16.mxu0 0
  %148 = vmatpush1.bf16.msra.mxu0 0
  %149 = vmatprep.subr.bf16.mxu0 0
  %150 = vmatpush1.bf16.msra.mxu0 0
  %151 = vmatprep.subr.bf16.mxu0 0
  %152 = vmatpush1.bf16.msra.mxu0 0
  %153 = vmatprep.mubr.bf16.mxu0 0
  %154 = vmatmul.mubr.bf16.gmra.mrb[0].mxu0 %v39
  %v155 = vpop.f32.mrb[0].mxu0
  %v156 = vadd.f32 0.0, %v155
  %v157 = vpop.f32.mrb[0].mxu0
  %v158 = vadd.f32 0.0, %v157
  %v159 = vpop.f32.mrb[0].mxu0
  %v160 = vadd.f32 0.0, %v159
  %v161 = vpop.f32.mrb[0].mxu0
  %v162 = vadd.f32 0.0, %v161
  %163 = vdwg.mxu0
  %s164 = scalar_lea.vmem %s1, 8
  %v165 = vld [vmem:[%s164] sm:$0xf]
  %v166 = vld [vmem:[%s164 + $0x4] sm:$0xf]
  %v169 = vunpack.c.l.b16 %v165
  %v170 = vunpack.c.l.b16 %v166
  %v171 = vpack.c.b16 %v170, %v169
  %173 = vmatprep.subr.bf16.mxu0 %v90
  %174 = vmatpush1.bf16.msra.mxu0 %v89
  %175 = vmatprep.subr.bf16.mxu0 %v92
  %176 = vmatpush1.bf16.msra.mxu0 %v91
  %177 = vmatprep.subr.bf16.mxu0 %v94
  %178 = vmatpush1.bf16.msra.mxu0 %v93
  %179 = vmatprep.subr.bf16.mxu0 %v96
  %180 = vmatpush1.bf16.msra.mxu0 %v95
  %181 = vmatprep.subr.bf16.mxu0 %v98
  %182 = vmatpush1.bf16.msra.mxu0 %v97
  %183 = vmatprep.subr.bf16.mxu0 %v100
  %184 = vmatpush1.bf16.msra.mxu0 %v99
  %185 = vmatprep.subr.bf16.mxu0 %v102
  %186 = vmatpush1.bf16.msra.mxu0 %v101
  %187 = vmatprep.subr.bf16.mxu0 %v104
  %188 = vmatpush1.bf16.msra.mxu0 %v103
  %189 = vmatprep.subr.bf16.mxu0 0
  %190 = vmatpush1.bf16.msra.mxu0 0
  %191 = vmatprep.subr.bf16.mxu0 0
  %192 = vmatpush1.bf16.msra.mxu0 0
  %193 = vmatprep.subr.bf16.mxu0 0
  %194 = vmatpush1.bf16.msra.mxu0 0
  %195 = vmatprep.subr.bf16.mxu0 0
  %196 = vmatpush1.bf16.msra.mxu0 0
  %197 = vmatprep.subr.bf16.mxu0 0
  %198 = vmatpush1.bf16.msra.mxu0 0
  %199 = vmatprep.subr.bf16.mxu0 0
  %200 = vmatpush1.bf16.msra.mxu0 0
  %201 = vmatprep.subr.bf16.mxu0 0
  %202 = vmatpush1.bf16.msra.mxu0 0
  %203 = vmatprep.subr.bf16.mxu0 0
  %204 = vmatpush1.bf16.msra.mxu0 0
  %205 = vmatprep.mubr.bf16.mxu0 0
  %206 = vmatmul.mubr.bf16.gmra.mrb[0].mxu0 %v171
  %v207 = vpop.f32.mrb[0].mxu0
  %v208 = vadd.f32 0.0, %v207
  %v209 = vpop.f32.mrb[0].mxu0
  %v210 = vadd.f32 0.0, %v209
  %v211 = vpop.f32.mrb[0].mxu0
  %v212 = vadd.f32 0.0, %v211
  %v213 = vpop.f32.mrb[0].mxu0
  %v214 = vadd.f32 0.0, %v213
  %215 = vdwg.mxu0
  %v216 = vmul.f32 %v156, %v156
  %v217 = vmul.f32 %v158, %v158
  %v218 = vmul.f32 %v160, %v160
  %v219 = vmul.f32 %v162, %v162
  %v220 = vmul.f32 %v208, %v208
  %v221 = vmul.f32 %v210, %v210
  %v222 = vmul.f32 %v212, %v212
  %v223 = vmul.f32 %v214, %v214
  %v224 = vadd.f32 %v216, %v220
  %v225 = vadd.f32 %v217, %v221
  %v226 = vadd.f32 %v218, %v222
  %v227 = vadd.f32 %v219, %v223
  %v228 = vld [vmem:[%s2] sm:$0xff]
  %v229 = vld [vmem:[%s2 + $0x8] sm:$0xff]
  %v230 = vld [vmem:[%s2 + $0x10] sm:$0xff]
  %v231 = vld [vmem:[%s2 + $0x18] sm:$0xff]
  %v232 = vld [vmem:[%s2 + $0x20] sm:$0xff]
  %v233 = vld [vmem:[%s2 + $0x28] sm:$0xff]
  %v234 = vld [vmem:[%s2 + $0x30] sm:$0xff]
  %v235 = vld [vmem:[%s2 + $0x38] sm:$0xff]
  %v236 = vld [vmem:[%s2 + $0x40] sm:$0xff]
  %v237 = vld [vmem:[%s2 + $0x48] sm:$0xff]
  %v238 = vld [vmem:[%s2 + $0x50] sm:$0xff]
  %v239 = vld [vmem:[%s2 + $0x58] sm:$0xff]
  %v240 = vld [vmem:[%s2 + $0x60] sm:$0xff]
  %v241 = vld [vmem:[%s2 + $0x68] sm:$0xff]
  %v242 = vld [vmem:[%s2 + $0x70] sm:$0xff]
  %v243 = vld [vmem:[%s2 + $0x78] sm:$0xff]
  %v244 = vld [vmem:[%s2 + $0x80] sm:$0xff]
  %v245 = vld [vmem:[%s2 + $0x88] sm:$0xff]
  %v246 = vld [vmem:[%s2 + $0x90] sm:$0xff]
  %v247 = vld [vmem:[%s2 + $0x98] sm:$0xff]
  %v248 = vld [vmem:[%s2 + $0xa0] sm:$0xff]
  %v249 = vld [vmem:[%s2 + $0xa8] sm:$0xff]
  %v250 = vld [vmem:[%s2 + $0xb0] sm:$0xff]
  %v251 = vld [vmem:[%s2 + $0xb8] sm:$0xff]
  %v252 = vld [vmem:[%s2 + $0xc0] sm:$0xff]
  %v253 = vld [vmem:[%s2 + $0xc8] sm:$0xff]
  %v254 = vld [vmem:[%s2 + $0xd0] sm:$0xff]
  %v255 = vld [vmem:[%s2 + $0xd8] sm:$0xff]
  %v256 = vld [vmem:[%s2 + $0xe0] sm:$0xff]
  %v257 = vld [vmem:[%s2 + $0xe8] sm:$0xff]
  %v258 = vld [vmem:[%s2 + $0xf0] sm:$0xff]
  %v259 = vld [vmem:[%s2 + $0xf8] sm:$0xff]
  %260 = vmatprep.subr.mxu0 0.0
  %261 = vmatpush1.msra.mxu0 %v228
  %262 = vmatprep.subr.mxu0 0.0
  %263 = vmatpush1.msra.mxu0 %v229
  %264 = vmatprep.subr.mxu0 0.0
  %265 = vmatpush1.msra.mxu0 %v230
  %266 = vmatprep.subr.mxu0 0.0
  %267 = vmatpush1.msra.mxu0 %v231
  %268 = vmatprep.subr.mxu0 0.0
  %269 = vmatpush1.msra.mxu0 %v232
  %270 = vmatprep.subr.mxu0 0.0
  %271 = vmatpush1.msra.mxu0 %v233
  %272 = vmatprep.subr.mxu0 0.0
  %273 = vmatpush1.msra.mxu0 %v234
  %274 = vmatprep.subr.mxu0 0.0
  %275 = vmatpush1.msra.mxu0 %v235
  %276 = vmatprep.subr.mxu0 0.0
  %277 = vmatpush1.msra.mxu0 %v236
  %278 = vmatprep.subr.mxu0 0.0
  %279 = vmatpush1.msra.mxu0 %v237
  %280 = vmatprep.subr.mxu0 0.0
  %281 = vmatpush1.msra.mxu0 %v238
  %282 = vmatprep.subr.mxu0 0.0
  %283 = vmatpush1.msra.mxu0 %v239
  %284 = vmatprep.subr.mxu0 0.0
  %285 = vmatpush1.msra.mxu0 %v240
  %286 = vmatprep.subr.mxu0 0.0
  %287 = vmatpush1.msra.mxu0 %v241
  %288 = vmatprep.subr.mxu0 0.0
  %289 = vmatpush1.msra.mxu0 %v242
  %290 = vmatprep.subr.mxu0 0.0
  %291 = vmatpush1.msra.mxu0 %v243
  %292 = vmatprep.subr.mxu0 0.0
  %293 = vmatpush1.msra.mxu0 %v244
  %294 = vmatprep.subr.mxu0 0.0
  %295 = vmatpush1.msra.mxu0 %v245
  %296 = vmatprep.subr.mxu0 0.0
  %297 = vmatpush1.msra.mxu0 %v246
  %298 = vmatprep.subr.mxu0 0.0
  %299 = vmatpush1.msra.mxu0 %v247
  %300 = vmatprep.subr.mxu0 0.0
  %301 = vmatpush1.msra.mxu0 %v248
  %302 = vmatprep.subr.mxu0 0.0
  %303 = vmatpush1.msra.mxu0 %v249
  %304 = vmatprep.subr.mxu0 0.0
  %305 = vmatpush1.msra.mxu0 %v250
  %306 = vmatprep.subr.mxu0 0.0
  %307 = vmatpush1.msra.mxu0 %v251
  %308 = vmatprep.subr.mxu0 0.0
  %309 = vmatpush1.msra.mxu0 %v252
  %310 = vmatprep.subr.mxu0 0.0
  %311 = vmatpush1.msra.mxu0 %v253
  %312 = vmatprep.subr.mxu0 0.0
  %313 = vmatpush1.msra.mxu0 %v254
  %314 = vmatprep.subr.mxu0 0.0
  %315 = vmatpush1.msra.mxu0 %v255
  %316 = vmatprep.subr.mxu0 0.0
  %317 = vmatpush1.msra.mxu0 %v256
  %318 = vmatprep.subr.mxu0 0.0
  %319 = vmatpush1.msra.mxu0 %v257
  %320 = vmatprep.subr.mxu0 0.0
  %321 = vmatpush1.msra.mxu0 %v258
  %322 = vmatprep.subr.mxu0 0.0
  %323 = vmatpush1.msra.mxu0 %v259
  %324 = vmatprep.mubr.f32.mxu0 %v225
  %325 = vmatmul.mubr.f32.gmra.mrb[0].mxu0 %v224
  %v326 = vpop.f32.mrb[0].mxu0
  %v327 = vadd.f32 0.0, %v326
  %v328 = vpop.f32.mrb[0].mxu0
  %329 = vmatprep.mubr.f32.mxu0 %v227
  %330 = vmatmul.mubr.f32.gmra.mrb[0].mxu0 %v226
  %v331 = vpop.f32.mrb[0].mxu0
  %v332 = vadd.f32 0.0, %v331
  %v333 = vpop.f32.mrb[0].mxu0
  %334 = vdwg.mxu0
  %vm335 = vcmask 31744
  %336 = vst.msk [vmem:[%s4] sm:$0xff] %vm335, %v327
  %337 = vst.msk [vmem:[%s4 + $0x8] sm:$0xff] %vm335, %v332
  %v338 = vpack.c.bf16 %v160, %v156
  %v339 = vpack.c.bf16 %v162, %v158
  %v342 = vunpack.c.l.b16 %v338
  %v343 = vunpack.c.l.b16 %v339
  %v344 = vunpack.c.h.b16 %v338
  %v345 = vunpack.c.h.b16 %v339
  %v346 = vpack.c.b16 %v343, %v342
  %v347 = vpack.c.b16 %v345, %v344
  %350 = vst [vmem:[%s3] sm:$0xff] %v346
  %351 = vst [vmem:[%s3 + $0x8] sm:$0xff] %v347
  %v352 = vpack.c.bf16 %v212, %v208
  %v353 = vpack.c.bf16 %v214, %v210
  %v356 = vunpack.c.l.b16 %v352
  %v357 = vunpack.c.l.b16 %v353
  %v358 = vunpack.c.h.b16 %v352
  %v359 = vunpack.c.h.b16 %v353
  %v360 = vpack.c.b16 %v357, %v356
  %v361 = vpack.c.b16 %v359, %v358
  %s364 = scalar_lea.vmem %s3, 16
  %365 = vst [vmem:[%s364] sm:$0xff] %v360
  %366 = vst [vmem:[%s364 + $0x8] sm:$0xff] %v361
  // Predicated region
  $region14: #{feature_extraction_block.3} parent=0 // pred_check
    _
  $region15: #{feature_extraction_block.3} parent=0 // pred_check_branch
    %368 = sbr.rel (0) target = $region17
  $region16: #{feature_extraction_block.3} parent=0 // pred_region
    _
  $region17: #{feature_extraction_block.3} parent=0 // pred_fallthru
    _
  // Predicated region
  $region18: #{feature_extraction_block.3} parent=0 // pred_check
    _
  $region19: #{feature_extraction_block.3} parent=0 // pred_check_branch
    %370 = sbr.rel (0) target = $region21
  $region20: #{feature_extraction_block.3} parent=0 // pred_region
    _
  $region21: #{feature_extraction_block.3} parent=0 // pred_fallthru
    _
  // Predicated region
  $region22: #{feature_extraction_block.3} parent=0 // pred_check
    _
  $region23: #{feature_extraction_block.3} parent=0 // pred_check_branch
    %372 = sbr.rel (0) target = $region25
  $region24: #{feature_extraction_block.3} parent=0 // pred_region
    _
  $region25: #{feature_extraction_block.3} parent=0 // pred_fallthru
    _
  // Predicated region
  $region26: #{feature_extraction_block.3} parent=0 // pred_check
    _
  $region27: #{feature_extraction_block.3} parent=0 // pred_check_branch
    %374 = sbr.rel (0) target = $region29
  $region28: #{feature_extraction_block.3} parent=0 // pred_region
    _
  $region29: #{feature_extraction_block.3} parent=0 // pred_fallthru
    _

// kernel: feature_extraction_block.5
$region0: #{feature_extraction_block.5}
  #allocation0 [shape = 'u32[]', space=smem, size = 0x4, offset = 0x4, fixed_abs, tag = 'smem constant byte address 0x4 - core index']
  #allocation1 [shape = 'u32[144,128]{1,0:T(1,128)}', space=vmem, size = 0x12000, scoped, tag = 'internal scratch']
  %s0 = inlined_call_operand.vmem [shape: bf16[2,128,16], index: 0, kind: input, shape index: {}]
  %s1 = inlined_call_operand.vmem [shape: bf16[2,16,256], index: 1, kind: input, shape index: {}]
  %s2 = inlined_call_operand.vmem [shape: f32[128,256], index: 2, kind: output, shape index: {}]
  %s3 = sld [smem:[#allocation0]]
  $region18: #{feature_extraction_block.5} parent=0
    _
  %s5 = ssub.s32 1, %s3
  %s6 = scalar_select 0, %s5, %s3
  // Predicated region
  $region2: #{feature_extraction_block.5} parent=0 // pred_check
    _
  $region3: #{feature_extraction_block.5} parent=0 // pred_check_branch
    %8 = sbr.rel (0) target = $region5
  $region4: #{feature_extraction_block.5} parent=0 // pred_region
    _
  $region5: #{feature_extraction_block.5} parent=0 // pred_fallthru
    _
  // Predicated region
  $region6: #{feature_extraction_block.5} parent=0 // pred_check
    _
  $region7: #{feature_extraction_block.5} parent=0 // pred_check_branch
    %10 = sbr.rel (0) target = $region9
  $region8: #{feature_extraction_block.5} parent=0 // pred_region
    _
  $region9: #{feature_extraction_block.5} parent=0 // pred_fallthru
    _
  %v12 = vld [vmem:[%s0] sm:$0xf]
  %v13 = vld [vmem:[%s0 + $0x4] sm:$0xf]
  %v14 = vld [vmem:[%s0 + $0x8] sm:$0xf]
  %v15 = vld [vmem:[%s0 + $0xc] sm:$0xf]
  %v16 = vld [vmem:[%s0 + $0x10] sm:$0xf]
  %v17 = vld [vmem:[%s0 + $0x14] sm:$0xf]
  %v18 = vld [vmem:[%s0 + $0x18] sm:$0xf]
  %v19 = vld [vmem:[%s0 + $0x1c] sm:$0xf]
  %v20 = vld [vmem:[%s0 + $0x20] sm:$0xf]
  %v21 = vld [vmem:[%s0 + $0x24] sm:$0xf]
  %v22 = vld [vmem:[%s0 + $0x28] sm:$0xf]
  %v23 = vld [vmem:[%s0 + $0x2c] sm:$0xf]
  %v24 = vld [vmem:[%s0 + $0x30] sm:$0xf]
  %v25 = vld [vmem:[%s0 + $0x34] sm:$0xf]
  %v26 = vld [vmem:[%s0 + $0x38] sm:$0xf]
  %v27 = vld [vmem:[%s0 + $0x3c] sm:$0xf]
  %v28 = vld [vmem:[%s1] sm:$0xff]
  %v29 = vld [vmem:[%s1 + $0x8] sm:$0xff]
  %s30 = scalar_lea.vmem %s0, 64
  %v31 = vld [vmem:[%s30] sm:$0xf]
  %v32 = vld [vmem:[%s30 + $0x4] sm:$0xf]
  %v33 = vld [vmem:[%s30 + $0x8] sm:$0xf]
  %v34 = vld [vmem:[%s30 + $0xc] sm:$0xf]
  %v35 = vld [vmem:[%s30 + $0x10] sm:$0xf]
  %v36 = vld [vmem:[%s30 + $0x14] sm:$0xf]
  %v37 = vld [vmem:[%s30 + $0x18] sm:$0xf]
  %v38 = vld [vmem:[%s30 + $0x1c] sm:$0xf]
  %v39 = vld [vmem:[%s30 + $0x20] sm:$0xf]
  %v40 = vld [vmem:[%s30 + $0x24] sm:$0xf]
  %v41 = vld [vmem:[%s30 + $0x28] sm:$0xf]
  %v42 = vld [vmem:[%s30 + $0x2c] sm:$0xf]
  %v43 = vld [vmem:[%s30 + $0x30] sm:$0xf]
  %v44 = vld [vmem:[%s30 + $0x34] sm:$0xf]
  %v45 = vld [vmem:[%s30 + $0x38] sm:$0xf]
  %v46 = vld [vmem:[%s30 + $0x3c] sm:$0xf]
  %s47 = scalar_lea.vmem %s1, 16
  %v48 = vld [vmem:[%s47] sm:$0xff]
  %v49 = vld [vmem:[%s47 + $0x8] sm:$0xff]
  %v66 = vunpack.c.l.b16 %v31
  %v67 = vunpack.c.l.b16 %v32
  %v68 = vunpack.c.l.b16 %v33
  %v69 = vunpack.c.l.b16 %v34
  %v70 = vunpack.c.l.b16 %v35
  %v71 = vunpack.c.l.b16 %v36
  %v72 = vunpack.c.l.b16 %v37
  %v73 = vunpack.c.l.b16 %v38
  %v74 = vunpack.c.l.b16 %v39
  %v75 = vunpack.c.l.b16 %v40
  %v76 = vunpack.c.l.b16 %v41
  %v77 = vunpack.c.l.b16 %v42
  %v78 = vunpack.c.l.b16 %v43
  %v79 = vunpack.c.l.b16 %v44
  %v80 = vunpack.c.l.b16 %v45
  %v81 = vunpack.c.l.b16 %v46
  %v82 = vpack.c.b16 %v67, %v66
  %v83 = vpack.c.b16 %v69, %v68
  %v84 = vpack.c.b16 %v71, %v70
  %v85 = vpack.c.b16 %v73, %v72
  %v86 = vpack.c.b16 %v75, %v74
  %v87 = vpack.c.b16 %v77, %v76
  %v88 = vpack.c.b16 %v79, %v78
  %v89 = vpack.c.b16 %v81, %v80
  %v92 = vunpack.c.l.b16 %v48
  %v93 = vunpack.c.h.b16 %v48
  %v94 = vunpack.c.l.b16 %v49
  %v95 = vunpack.c.h.b16 %v49
  %v96 = vpack.c.b16 %v94, %v92
  %v97 = vpack.c.b16 %v95, %v93
  %vm100 = vcmask 130048
  %v102 = vsel %vm100, %v82, 0
  %v105 = vsel %vm100, %v83, 0
  %v108 = vsel %vm100, %v84, 0
  %v111 = vsel %vm100, %v85, 0
  %v114 = vsel %vm100, %v86, 0
  %v117 = vsel %vm100, %v87, 0
  %v120 = vsel %vm100, %v88, 0
  %v123 = vsel %vm100, %v89, 0
  %125 = vmatprep.subr.bf16.mxu0 %v97
  %126 = vmatpush1.bf16.msra.mxu0 %v96
  %127 = vmatprep.subr.bf16.mxu0 0
  %128 = vmatpush1.bf16.msra.mxu0 0
  %129 = vmatprep.subr.bf16.mxu0 0
  %130 = vmatpush1.bf16.msra.mxu0 0
  %131 = vmatprep.subr.bf16.mxu0 0
  %132 = vmatpush1.bf16.msra.mxu0 0
  %133 = vmatprep.subr.bf16.mxu0 0
  %134 = vmatpush1.bf16.msra.mxu0 0
  %135 = vmatprep.subr.bf16.mxu0 0
  %136 = vmatpush1.bf16.msra.mxu0 0
  %137 = vmatprep.subr.bf16.mxu0 0
  %138 = vmatpush1.bf16.msra.mxu0 0
  %139 = vmatprep.subr.bf16.mxu0 0
  %140 = vmatpush1.bf16.msra.mxu0 0
  %141 = vmatprep.subr.bf16.mxu0 0
  %142 = vmatpush1.bf16.msra.mxu0 0
  %143 = vmatprep.subr.bf16.mxu0 0
  %144 = vmatpush1.bf16.msra.mxu0 0
  %145 = vmatprep.subr.bf16.mxu0 0
  %146 = vmatpush1.bf16.msra.mxu0 0
  %147 = vmatprep.subr.bf16.mxu0 0
  %148 = vmatpush1.bf16.msra.mxu0 0
  %149 = vmatprep.subr.bf16.mxu0 0
  %150 = vmatpush1.bf16.msra.mxu0 0
  %151 = vmatprep.subr.bf16.mxu0 0
  %152 = vmatpush1.bf16.msra.mxu0 0
  %153 = vmatprep.subr.bf16.mxu0 0
  %154 = vmatpush1.bf16.msra.mxu0 0
  %155 = vmatprep.subr.bf16.mxu0 0
  %156 = vmatpush1.bf16.msra.mxu0 0
  %157 = vmatprep.mubr.bf16.mxu0 0
  %158 = vmatmul.mubr.bf16.gmra.mrb[0].mxu0 %v102
  %v159 = vpop.f32.mrb[0].mxu0
  %v160 = vadd.f32 0.0, %v159
  %v161 = vpop.f32.mrb[0].mxu0
  %v162 = vadd.f32 0.0, %v161
  %v163 = vpop.f32.mrb[0].mxu0
  %v164 = vadd.f32 0.0, %v163
  %v165 = vpop.f32.mrb[0].mxu0
  %v166 = vadd.f32 0.0, %v165
  %167 = vmatprep.mubr.bf16.mxu0 0
  %168 = vmatmul.mubr.bf16.gmra.mrb[0].mxu0 %v105
  %v169 = vpop.f32.mrb[0].mxu0
  %v170 = vadd.f32 0.0, %v169
  %v171 = vpop.f32.mrb[0].mxu0
  %v172 = vadd.f32 0.0, %v171
  %v173 = vpop.f32.mrb[0].mxu0
  %v174 = vadd.f32 0.0, %v173
  %v175 = vpop.f32.mrb[0].mxu0
  %v176 = vadd.f32 0.0, %v175
  %177 = vmatprep.mubr.bf16.mxu0 0
  %178 = vmatmul.mubr.bf16.gmra.mrb[0].mxu0 %v108
  %v179 = vpop.f32.mrb[0].mxu0
  %v180 = vadd.f32 0.0, %v179
  %v181 = vpop.f32.mrb[0].mxu0
  %v182 = vadd.f32 0.0, %v181
  %v183 = vpop.f32.mrb[0].mxu0
  %v184 = vadd.f32 0.0, %v183
  %v185 = vpop.f32.mrb[0].mxu0
  %v186 = vadd.f32 0.0, %v185
  %187 = vmatprep.mubr.bf16.mxu0 0
  %188 = vmatmul.mubr.bf16.gmra.mrb[0].mxu0 %v111
  %v189 = vpop.f32.mrb[0].mxu0
  %v190 = vadd.f32 0.0, %v189
  %v191 = vpop.f32.mrb[0].mxu0
  %v192 = vadd.f32 0.0, %v191
  %v193 = vpop.f32.mrb[0].mxu0
  %v194 = vadd.f32 0.0, %v193
  %v195 = vpop.f32.mrb[0].mxu0
  %v196 = vadd.f32 0.0, %v195
  %197 = vmatprep.mubr.bf16.mxu0 0
  %198 = vmatmul.mubr.bf16.gmra.mrb[0].mxu0 %v114
  %v199 = vpop.f32.mrb[0].mxu0
  %v200 = vadd.f32 0.0, %v199
  %v201 = vpop.f32.mrb[0].mxu0
  %v202 = vadd.f32 0.0, %v201
  %v203 = vpop.f32.mrb[0].mxu0
  %v204 = vadd.f32 0.0, %v203
  %v205 = vpop.f32.mrb[0].mxu0
  %v206 = vadd.f32 0.0, %v205
  %207 = vmatprep.mubr.bf16.mxu0 0
  %208 = vmatmul.mubr.bf16.gmra.mrb[0].mxu0 %v117
  %v209 = vpop.f32.mrb[0].mxu0
  %v210 = vadd.f32 0.0, %v209
  %v211 = vpop.f32.mrb[0].mxu0
  %v212 = vadd.f32 0.0, %v211
  %v213 = vpop.f32.mrb[0].mxu0
  %v214 = vadd.f32 0.0, %v213
  %v215 = vpop.f32.mrb[0].mxu0
  %v216 = vadd.f32 0.0, %v215
  %217 = vmatprep.mubr.bf16.mxu0 0
  %218 = vmatmul.mubr.bf16.gmra.mrb[0].mxu0 %v120
  %v219 = vpop.f32.mrb[0].mxu0
  %v220 = vadd.f32 0.0, %v219
  %v221 = vpop.f32.mrb[0].mxu0
  %v222 = vadd.f32 0.0, %v221
  %v223 = vpop.f32.mrb[0].mxu0
  %v224 = vadd.f32 0.0, %v223
  %v225 = vpop.f32.mrb[0].mxu0
  %v226 = vadd.f32 0.0, %v225
  %227 = vmatprep.mubr.bf16.mxu0 0
  %228 = vmatmul.mubr.bf16.gmra.mrb[0].mxu0 %v123
  %v229 = vpop.f32.mrb[0].mxu0
  %v230 = vadd.f32 0.0, %v229
  %v231 = vpop.f32.mrb[0].mxu0
  %v232 = vadd.f32 0.0, %v231
  %v233 = vpop.f32.mrb[0].mxu0
  %v234 = vadd.f32 0.0, %v233
  %v235 = vpop.f32.mrb[0].mxu0
  %v236 = vadd.f32 0.0, %v235
  %237 = vdwg.mxu0
  %v254 = vunpack.c.l.b16 %v12
  %v255 = vunpack.c.l.b16 %v13
  %v256 = vunpack.c.l.b16 %v14
  %v257 = vunpack.c.l.b16 %v15
  %v258 = vunpack.c.l.b16 %v16
  %v259 = vunpack.c.l.b16 %v17
  %v260 = vunpack.c.l.b16 %v18
  %v261 = vunpack.c.l.b16 %v19
  %v262 = vunpack.c.l.b16 %v20
  %v263 = vunpack.c.l.b16 %v21
  %v264 = vunpack.c.l.b16 %v22
  %v265 = vunpack.c.l.b16 %v23
  %v266 = vunpack.c.l.b16 %v24
  %v267 = vunpack.c.l.b16 %v25
  %v268 = vunpack.c.l.b16 %v26
  %v269 = vunpack.c.l.b16 %v27
  %v270 = vpack.c.b16 %v255, %v254
  %v271 = vpack.c.b16 %v257, %v256
  %v272 = vpack.c.b16 %v259, %v258
  %v273 = vpack.c.b16 %v261, %v260
  %v274 = vpack.c.b16 %v263, %v262
  %v275 = vpack.c.b16 %v265, %v264
  %v276 = vpack.c.b16 %v267, %v266
  %v277 = vpack.c.b16 %v269, %v268
  %v280 = vunpack.c.l.b16 %v28
  %v281 = vunpack.c.h.b16 %v28
  %v282 = vunpack.c.l.b16 %v29
  %v283 = vunpack.c.h.b16 %v29
  %v284 = vpack.c.b16 %v282, %v280
  %v285 = vpack.c.b16 %v283, %v281
  %v289 = vsel %vm100, %v270, 0
  %v292 = vsel %vm100, %v271, 0
  %v295 = vsel %vm100, %v272, 0
  %v298 = vsel %vm100, %v273, 0
  %v301 = vsel %vm100, %v274, 0
  %v304 = vsel %vm100, %v275, 0
  %v307 = vsel %vm100, %v276, 0
  %v310 = vsel %vm100, %v277, 0
  %312 = vmatprep.subr.bf16.mxu0 %v285
  %313 = vmatpush1.bf16.msra.mxu0 %v284
  %314 = vmatprep.subr.bf16.mxu0 0
  %315 = vmatpush1.bf16.msra.mxu0 0
  %316 = vmatprep.subr.bf16.mxu0 0
  %317 = vmatpush1.bf16.msra.mxu0 0
  %318 = vmatprep.subr.bf16.mxu0 0
  %319 = vmatpush1.bf16.msra.mxu0 0
  %320 = vmatprep.subr.bf16.mxu0 0
  %321 = vmatpush1.bf16.msra.mxu0 0
  %322 = vmatprep.subr.bf16.mxu0 0
  %323 = vmatpush1.bf16.msra.mxu0 0
  %324 = vmatprep.subr.bf16.mxu0 0
  %325 = vmatpush1.bf16.msra.mxu0 0
  %326 = vmatprep.subr.bf16.mxu0 0
  %327 = vmatpush1.bf16.msra.mxu0 0
  %328 = vmatprep.subr.bf16.mxu0 0
  %329 = vmatpush1.bf16.msra.mxu0 0
  %330 = vmatprep.subr.bf16.mxu0 0
  %331 = vmatpush1.bf16.msra.mxu0 0
  %332 = vmatprep.subr.bf16.mxu0 0
  %333 = vmatpush1.bf16.msra.mxu0 0
  %334 = vmatprep.subr.bf16.mxu0 0
  %335 = vmatpush1.bf16.msra.mxu0 0
  %336 = vmatprep.subr.bf16.mxu0 0
  %337 = vmatpush1.bf16.msra.mxu0 0
  %338 = vmatprep.subr.bf16.mxu0 0
  %339 = vmatpush1.bf16.msra.mxu0 0
  %340 = vmatprep.subr.bf16.mxu0 0
  %341 = vmatpush1.bf16.msra.mxu0 0
  %342 = vmatprep.subr.bf16.mxu0 0
  %343 = vmatpush1.bf16.msra.mxu0 0
  %344 = vmatprep.mubr.bf16.mxu0 0
  %345 = vmatmul.mubr.bf16.gmra.mrb[0].mxu0 %v289
  %v346 = vpop.f32.mrb[0].mxu0
  %v347 = vadd.f32 %v160, %v346
  %v348 = vpop.f32.mrb[0].mxu0
  %v349 = vadd.f32 %v162, %v348
  %v350 = vpop.f32.mrb[0].mxu0
  %v351 = vadd.f32 %v164, %v350
  %v352 = vpop.f32.mrb[0].mxu0
  %v353 = vadd.f32 %v166, %v352
  %354 = vmatprep.mubr.bf16.mxu0 0
  %355 = vmatmul.mubr.bf16.gmra.mrb[0].mxu0 %v292
  %v356 = vpop.f32.mrb[0].mxu0
  %v357 = vadd.f32 %v170, %v356
  %v358 = vpop.f32.mrb[0].mxu0
  %v359 = vadd.f32 %v172, %v358
  %v360 = vpop.f32.mrb[0].mxu0
  %v361 = vadd.f32 %v174, %v360
  %v362 = vpop.f32.mrb[0].mxu0
  %v363 = vadd.f32 %v176, %v362
  %364 = vmatprep.mubr.bf16.mxu0 0
  %365 = vmatmul.mubr.bf16.gmra.mrb[0].mxu0 %v295
  %v366 = vpop.f32.mrb[0].mxu0
  %v367 = vadd.f32 %v180, %v366
  %v368 = vpop.f32.mrb[0].mxu0
  %v369 = vadd.f32 %v182, %v368
  %v370 = vpop.f32.mrb[0].mxu0
  %v371 = vadd.f32 %v184, %v370
  %v372 = vpop.f32.mrb[0].mxu0
  %v373 = vadd.f32 %v186, %v372
  %374 = vmatprep.mubr.bf16.mxu0 0
  %375 = vmatmul.mubr.bf16.gmra.mrb[0].mxu0 %v298
  %v376 = vpop.f32.mrb[0].mxu0
  %v377 = vadd.f32 %v190, %v376
  %v378 = vpop.f32.mrb[0].mxu0
  %v379 = vadd.f32 %v192, %v378
  %v380 = vpop.f32.mrb[0].mxu0
  %v381 = vadd.f32 %v194, %v380
  %v382 = vpop.f32.mrb[0].mxu0
  %v383 = vadd.f32 %v196, %v382
  %384 = vmatprep.mubr.bf16.mxu0 0
  %385 = vmatmul.mubr.bf16.gmra.mrb[0].mxu0 %v301
  %v386 = vpop.f32.mrb[0].mxu0
  %v387 = vadd.f32 %v200, %v386
  %v388 = vpop.f32.mrb[0].mxu0
  %v389 = vadd.f32 %v202, %v388
  %v390 = vpop.f32.mrb[0].mxu0
  %v391 = vadd.f32 %v204, %v390
  %v392 = vpop.f32.mrb[0].mxu0
  %v393 = vadd.f32 %v206, %v392
  %394 = vmatprep.mubr.bf16.mxu0 0
  %395 = vmatmul.mubr.bf16.gmra.mrb[0].mxu0 %v304
  %v396 = vpop.f32.mrb[0].mxu0
  %v397 = vadd.f32 %v210, %v396
  %v398 = vpop.f32.mrb[0].mxu0
  %v399 = vadd.f32 %v212, %v398
  %v400 = vpop.f32.mrb[0].mxu0
  %v401 = vadd.f32 %v214, %v400
  %v402 = vpop.f32.mrb[0].mxu0
  %v403 = vadd.f32 %v216, %v402
  %404 = vmatprep.mubr.bf16.mxu0 0
  %405 = vmatmul.mubr.bf16.gmra.mrb[0].mxu0 %v307
  %v406 = vpop.f32.mrb[0].mxu0
  %v407 = vadd.f32 %v220, %v406
  %v408 = vpop.f32.mrb[0].mxu0
  %v409 = vadd.f32 %v222, %v408
  %v410 = vpop.f32.mrb[0].mxu0
  %v411 = vadd.f32 %v224, %v410
  %v412 = vpop.f32.mrb[0].mxu0
  %v413 = vadd.f32 %v226, %v412
  %414 = vmatprep.mubr.bf16.mxu0 0
  %415 = vmatmul.mubr.bf16.gmra.mrb[0].mxu0 %v310
  %v416 = vpop.f32.mrb[0].mxu0
  %v417 = vadd.f32 %v230, %v416
  %v418 = vpop.f32.mrb[0].mxu0
  %v419 = vadd.f32 %v232, %v418
  %v420 = vpop.f32.mrb[0].mxu0
  %v421 = vadd.f32 %v234, %v420
  %v422 = vpop.f32.mrb[0].mxu0
  %v423 = vadd.f32 %v236, %v422
  %424 = vdwg.mxu0
  %425 = vst [vmem:[%s2] sm:$0xff] %v347
  %426 = vst [vmem:[%s2 + $0x8] sm:$0xff] %v349
  %427 = vst [vmem:[%s2 + $0x10] sm:$0xff] %v351
  %428 = vst [vmem:[%s2 + $0x18] sm:$0xff] %v353
  %429 = vst [vmem:[%s2 + $0x20] sm:$0xff] %v357
  %430 = vst [vmem:[%s2 + $0x28] sm:$0xff] %v359
  %431 = vst [vmem:[%s2 + $0x30] sm:$0xff] %v361
  %432 = vst [vmem:[%s2 + $0x38] sm:$0xff] %v363
  %433 = vst [vmem:[%s2 + $0x40] sm:$0xff] %v367
  %434 = vst [vmem:[%s2 + $0x48] sm:$0xff] %v369
  %435 = vst [vmem:[%s2 + $0x50] sm:$0xff] %v371
  %436 = vst [vmem:[%s2 + $0x58] sm:$0xff] %v373
  %437 = vst [vmem:[%s2 + $0x60] sm:$0xff] %v377
  %438 = vst [vmem:[%s2 + $0x68] sm:$0xff] %v379
  %439 = vst [vmem:[%s2 + $0x70] sm:$0xff] %v381
  %440 = vst [vmem:[%s2 + $0x78] sm:$0xff] %v383
  %441 = vst [vmem:[%s2 + $0x80] sm:$0xff] %v387
  %442 = vst [vmem:[%s2 + $0x88] sm:$0xff] %v389
  %443 = vst [vmem:[%s2 + $0x90] sm:$0xff] %v391
  %444 = vst [vmem:[%s2 + $0x98] sm:$0xff] %v393
  %445 = vst [vmem:[%s2 + $0xa0] sm:$0xff] %v397
  %446 = vst [vmem:[%s2 + $0xa8] sm:$0xff] %v399
  %447 = vst [vmem:[%s2 + $0xb0] sm:$0xff] %v401
  %448 = vst [vmem:[%s2 + $0xb8] sm:$0xff] %v403
  %449 = vst [vmem:[%s2 + $0xc0] sm:$0xff] %v407
  %450 = vst [vmem:[%s2 + $0xc8] sm:$0xff] %v409
  %451 = vst [vmem:[%s2 + $0xd0] sm:$0xff] %v411
  %452 = vst [vmem:[%s2 + $0xd8] sm:$0xff] %v413
  %453 = vst [vmem:[%s2 + $0xe0] sm:$0xff] %v417
  %454 = vst [vmem:[%s2 + $0xe8] sm:$0xff] %v419
  %455 = vst [vmem:[%s2 + $0xf0] sm:$0xff] %v421
  %456 = vst [vmem:[%s2 + $0xf8] sm:$0xff] %v423
  // Predicated region
  $region10: #{feature_extraction_block.5} parent=0 // pred_check
    _
  $region11: #{feature_extraction_block.5} parent=0 // pred_check_branch
    %458 = sbr.rel (0) target = $region13
  $region12: #{feature_extraction_block.5} parent=0 // pred_region
    _
  $region13: #{feature_extraction_block.5} parent=0 // pred_fallthru
    _
  // Predicated region
  $region14: #{feature_extraction_block.5} parent=0 // pred_check
    _
  $region15: #{feature_extraction_block.5} parent=0 // pred_check_branch
    %460 = sbr.rel (0) target = $region17
  $region16: #{feature_extraction_block.5} parent=0 // pred_region
    _
  $region17: #{feature_extraction_block.5} parent=0 // pred_fallthru
    _

</llo_original>
